<compile_context>
chip_gen: v6e
topology: v6e:2x2x1
jax: 0.10.0
libtpu: 0.0.40
codegen_flags: <defaults>
</compile_context>

<pallas_src>
import jax
import jax.numpy as jnp
from jax.experimental import pallas as pl
from jax.experimental.pallas import tpu as pltpu

_HAS_BUFFERED = hasattr(pl, "Buffered")
_MIN_SHARD_ROWS = 256  # minimum rows per TensorCore for the v7x megacore split


def _round_up(n, m):
    return ((n + m - 1) // m) * m


def _tensorcores_per_chip():
    """2 on v7x (megacore), 1 on v5e/v6e.  Conservative fallback: 1."""
    try:
        kind = (getattr(jax.devices()[0], "device_kind", "") or "").lower()
        if "v7" in kind:
            return 2
    except Exception:
        pass
    return 1


def _mlp_kernel(x_ref,
                w1_ref, b1_ref,
                w2_ref, b2_ref,
                w3_ref, b3_ref,
                w4_ref, b4_ref,
                o_ref):
    """Fused 4-layer MLP on one batch tile.  Weights resident in VMEM.

    MXU inputs use the weights' dtype (bf16 on the fast path); accumulation,
    bias add and ReLU stay in float32.  Note the bf16 path downcasts the
    activations between layers (in addition to bf16 weights) to stay on the
    MXU fast path; accuracy is bounded by the f32 accumulation.

    NOTE: on a partial final batch block the matmul chain runs over the whole
    (stale) tile; the result is correct because Pallas masks the writeback, but
    do not add reductions over the batch rows here without masking them.
    """
    cdt = w1_ref.dtype
    h = x_ref[...].astype(cdt)

    # Layer 1: Linear + ReLU   (Dropout == identity in eval mode)
    h = jnp.dot(h, w1_ref[...], preferred_element_type=jnp.float32) + b1_ref[...]
    h = jnp.maximum(h, 0.0).astype(cdt)

    # Layer 2: Linear + ReLU
    h = jnp.dot(h, w2_ref[...], preferred_element_type=jnp.float32) + b2_ref[...]
    h = jnp.maximum(h, 0.0).astype(cdt)

    # Layer 3: Linear + ReLU
    h = jnp.dot(h, w3_ref[...], preferred_element_type=jnp.float32) + b3_ref[...]
    h = jnp.maximum(h, 0.0).astype(cdt)

    # Output layer: Linear (no activation)
    out = jnp.dot(h, w4_ref[...], preferred_element_type=jnp.float32) + b4_ref[...]
    o_ref[...] = out.astype(o_ref.dtype)


def dnn_speech_enhancer(x, params, *, batch_tile=None, out_dtype=None,
                        vmem_limit_bytes=None):
    """Forward pass of DNNSpeechEnhancer.

    x      : (B, input_size) or (input_size,).  bf16 x halves input DMA bytes.
    params : dict with w1..w4 stored as (in, out) and b1..b4 as (1, out).
             bf16 weights (see cast_weights) are the recommended default.
    out_dtype : output dtype (default: x.dtype).  bf16 halves output DMA bytes.
    """
    squeeze = False
    if x.ndim == 1:
        x = x[None, :]
        squeeze = True
    elif x.ndim != 2:
        raise ValueError(f"Invalid input dimension: {x.ndim}")

    B, in_size = x.shape
    out_size = params["w4"].shape[1]
    out_dtype = x.dtype if out_dtype is None else out_dtype
    out_itemsize = jnp.dtype(out_dtype).itemsize
    x_itemsize = jnp.dtype(x.dtype).itemsize

    # --- batch tile selection ------------------------------------------------
    # Big tiles amortize per-grid-step overhead and DMA latency.  Single-TC
    # chips (v5e/v6e) never get a forced split; v7x gets a 2-way split only
    # when the grid would otherwise be a single step AND each shard keeps
    # >= _MIN_SHARD_ROWS rows.
    if batch_tile is None:
        batch_tile = 2048 if B >= 4096 else 1024
    bt = _round_up(max(int(batch_tile), 8), 8)
    if B < 8:
        tile = B                                    # single full-batch block
    else:
        tile = min(bt, _round_up(B, 8))
        if (_tensorcores_per_chip() >= 2
                and pl.cdiv(B, tile) < 2
                and B >= 2 * _MIN_SHARD_ROWS):
            tile = max(_MIN_SHARD_ROWS, _round_up(pl.cdiv(B, 2), 8))

    # --- VMEM budget ----------------------------------------------------------
    params_bytes = sum(int(v.size) * v.dtype.itemsize for v in params.values())
    weight_bufs = 1 if _HAS_BUFFERED else 2

    def vmem_est(t):
        io = 2 * t * (in_size * x_itemsize + out_size * out_itemsize)  # dbl-buf
        return io + weight_bufs * params_bytes + (2 << 20)             # margin

    while tile > 256 and vmem_est(tile) > (48 << 20):   # keep under v7x 64 MiB
        tile = max(256, _round_up(tile // 2, 8))
    if vmem_limit_bytes is None and vmem_est(tile) > (14 << 20):
        # v5e's scoped-VMEM default is 16 MiB; raise it only when needed.
        vmem_limit_bytes = min(int(vmem_est(tile) * 1.25), 56 << 20)

    grid = (pl.cdiv(B, tile),)                      # final block may be partial

    # --- scheduler hint -------------------------------------------------------
    flops = 2 * B * sum(params[f"w{i}"].shape[0] * params[f"w{i}"].shape[1]
                        for i in range(1, 5))
    bytes_accessed = (int(x.size) * x_itemsize
                      + B * out_size * out_itemsize
                      + params_bytes)
    cost = pl.CostEstimate(flops=flops, transcendentals=0,
                           bytes_accessed=bytes_accessed)

    flat_args = (x,
                 params["w1"], params["b1"],
                 params["w2"], params["b2"],
                 params["w3"], params["b3"],
                 params["w4"], params["b4"])

    def build(single_buffer_weights):
        def resident(arr):
            # Whole-array block, same block every grid step -> VMEM-resident.
            kw = {}
            if single_buffer_weights:
                kw["pipeline_mode"] = pl.Buffered(1)   # drop unused 2nd buffer
            return pl.BlockSpec(arr.shape, lambda i: (0, 0), **kw)

        return pl.pallas_call(
            _mlp_kernel,
            out_shape=jax.ShapeDtypeStruct((B, out_size), out_dtype),
            grid_spec=pltpu.PrefetchScalarGridSpec(
                num_scalar_prefetch=0,
                grid=grid,
                in_specs=[
                    pl.BlockSpec((tile, in_size), lambda i: (i, 0)),   # x tile
                    resident(params["w1"]), resident(params["b1"]),
                    resident(params["w2"]), resident(params["b2"]),
                    resident(params["w3"]), resident(params["b3"]),
                    resident(params["w4"]), resident(params["b4"]),
                ],
                out_specs=pl.BlockSpec((tile, out_size), lambda i: (i, 0)),
            ),
            compiler_params=pltpu.CompilerParams(
                dimension_semantics=("parallel",),
                vmem_limit_bytes=vmem_limit_bytes,
            ),
            cost_estimate=cost,
        )

    try:
        out = build(_HAS_BUFFERED)(*flat_args)
    except Exception:
        # Portability fallback if pipeline_mode=pl.Buffered(1) is unsupported.
        out = build(False)(*flat_args)

    if squeeze:
        out = out[0]
    return out


def init_params(key, input_size, hidden_sizes, output_size, dtype=jnp.float32):
    """Deterministic uniform init (PyTorch-Linear-style bounds)."""
    sizes = [input_size] + list(hidden_sizes) + [output_size]
    params = {}
    for idx in range(len(sizes) - 1):
        fan_in, fan_out = sizes[idx], sizes[idx + 1]
        key, kw, kb = jax.random.split(key, 3)
        bound = 1.0 / float(fan_in) ** 0.5
        # stored as (in, out): transpose of PyTorch's (out, in)
        params[f"w{idx + 1}"] = jax.random.uniform(
            kw, (fan_in, fan_out), dtype, minval=-bound, maxval=bound)
        params[f"b{idx + 1}"] = jax.random.uniform(
            kb, (1, fan_out), dtype, minval=-bound, maxval=bound)
    return params


def cast_weights(params, dtype=jnp.bfloat16):
    """Cast weight matrices (not biases) to `dtype` for the MXU fast path."""
    return {k: (v.astype(dtype) if k.startswith("w") else v)
            for k, v in params.items()}


def _reference_forward(x, params):
    """Plain-JAX f32 reference for correctness check."""
    if x.ndim == 1:
        x = x[None, :]
    h = x
    for i in range(1, 4):
        h = jnp.maximum(h @ params[f"w{i}"] + params[f"b{i}"], 0.0)
    return h @ params["w4"] + params["b4"]


if __name__ == "__main__":
    # Small shapes consistent with the module's forward:
    # input_size=256, hidden_sizes=[128, 128, 128], output_size=256
    INPUT_SIZE = 256
    HIDDEN = [128, 128, 128]
    OUTPUT_SIZE = 256

    key = jax.random.PRNGKey(0)
    key, kx, kx2 = jax.random.split(key, 3)
    params_f32 = init_params(key, INPUT_SIZE, HIDDEN, OUTPUT_SIZE)

    # --- f32 path, B=40: one full-batch block (no forced split) ---------------
    B = 40
    x = jax.random.normal(kx, (B, INPUT_SIZE), jnp.float32)
    ref = _reference_forward(x, params_f32)
    out_f32 = jax.block_until_ready(dnn_speech_enhancer(x, params_f32))
    assert out_f32.shape == (B, OUTPUT_SIZE), out_f32.shape
    assert jnp.allclose(out_f32, ref, atol=1e-4, rtol=1e-4), "f32 mismatch vs reference"

    # --- bf16 weights + bf16 I/O (deployment-default fast path) ---------------
    params_bf16 = cast_weights(params_f32, jnp.bfloat16)
    out_bf16 = jax.block_until_ready(
        dnn_speech_enhancer(x.astype(jnp.bfloat16), params_bf16,
                            out_dtype=jnp.bfloat16))
    assert out_bf16.shape == (B, OUTPUT_SIZE), out_bf16.shape
    assert out_bf16.dtype == jnp.bfloat16
    assert jnp.allclose(out_bf16.astype(jnp.float32), ref, atol=1e-1, rtol=1e-1), \
        "bf16 mismatch vs reference"

    # --- multi-step grid + partial final block (no host-side padding) ---------
    B2 = 136
    x2 = jax.random.normal(kx2, (B2, INPUT_SIZE), jnp.float32)
    ref2 = _reference_forward(x2, params_f32)
    out2 = jax.block_until_ready(
        dnn_speech_enhancer(x2, params_f32, batch_tile=64))
    assert out2.shape == (B2, OUTPUT_SIZE), out2.shape
    assert jnp.allclose(out2, ref2, atol=1e-4, rtol=1e-4), "partial-block mismatch"

    # --- 1-D input path (matches x.dim() == 1 branch of the module) -----------
    out_1d = jax.block_until_ready(dnn_speech_enhancer(x[0], params_f32))
    assert out_1d.shape == (OUTPUT_SIZE,), out_1d.shape
    assert jnp.allclose(out_1d, ref[0], atol=1e-4, rtol=1e-4), "1-D path mismatch"

    print("KERNEL_OK")
</pallas_src>

<mosaic_0001>
module attributes {stable_mosaic.version = 11 : i64} {
  func.func @_mlp_kernel(%arg0: i32, %arg1: memref<40x256xf32, #tpu.memory_space<vmem>>, %arg2: memref<256x128xf32, #tpu.memory_space<vmem>>, %arg3: memref<1x128xf32, #tpu.memory_space<vmem>>, %arg4: memref<128x128xf32, #tpu.memory_space<vmem>>, %arg5: memref<1x128xf32, #tpu.memory_space<vmem>>, %arg6: memref<128x128xf32, #tpu.memory_space<vmem>>, %arg7: memref<1x128xf32, #tpu.memory_space<vmem>>, %arg8: memref<128x256xf32, #tpu.memory_space<vmem>>, %arg9: memref<1x256xf32, #tpu.memory_space<vmem>>, %arg10: memref<40x256xf32, #tpu.memory_space<vmem>>) attributes {dimension_semantics = [#tpu.dimension_semantics<parallel>], iteration_bounds = array<i64: 1>, scalar_prefetch = 0 : i64, scratch_operands = 0 : i64, tpu.core_type = #tpu.core_type<tc>, window_params = [{transform_indices = @transform_0, window_bounds = array<i64: 40, 256>}, {pipeline_mode = #tpu.pipeline_mode<synchronous>, transform_indices = @transform_1, window_bounds = array<i64: 256, 128>}, {pipeline_mode = #tpu.pipeline_mode<synchronous>, transform_indices = @transform_2, window_bounds = array<i64: 1, 128>}, {pipeline_mode = #tpu.pipeline_mode<synchronous>, transform_indices = @transform_3, window_bounds = array<i64: 128, 128>}, {pipeline_mode = #tpu.pipeline_mode<synchronous>, transform_indices = @transform_4, window_bounds = array<i64: 1, 128>}, {pipeline_mode = #tpu.pipeline_mode<synchronous>, transform_indices = @transform_5, window_bounds = array<i64: 128, 128>}, {pipeline_mode = #tpu.pipeline_mode<synchronous>, transform_indices = @transform_6, window_bounds = array<i64: 1, 128>}, {pipeline_mode = #tpu.pipeline_mode<synchronous>, transform_indices = @transform_7, window_bounds = array<i64: 128, 256>}, {pipeline_mode = #tpu.pipeline_mode<synchronous>, transform_indices = @transform_8, window_bounds = array<i64: 1, 256>}, {transform_indices = @transform_9, window_bounds = array<i64: 40, 256>}]} {
    %c0 = arith.constant 0 : index
    %c0_0 = arith.constant 0 : index
    %0 = vector.load %arg1[%c0, %c0_0] : memref<40x256xf32, #tpu.memory_space<vmem>>, vector<40x256xf32>
    %c0_1 = arith.constant 0 : index
    %c0_2 = arith.constant 0 : index
    %1 = vector.load %arg2[%c0_1, %c0_2] : memref<256x128xf32, #tpu.memory_space<vmem>>, vector<256x128xf32>
    %cst = arith.constant dense<0.000000e+00> : vector<40x128xf32>
    %2 = tpu.matmul %0, %1, %cst {dimension_numbers = #tpu.dot_dimension_numbers<[1], [0], [0], [1], [0, 0, 1, 1], [], []>} : vector<40x256xf32>, vector<256x128xf32>, vector<40x128xf32> -> vector<40x128xf32>
    %c0_3 = arith.constant 0 : index
    %c0_4 = arith.constant 0 : index
    %3 = vector.load %arg3[%c0_3, %c0_4] : memref<1x128xf32, #tpu.memory_space<vmem>>, vector<1x128xf32>
    %4 = vector.broadcast %3 : vector<1x128xf32> to vector<40x128xf32>
    %5 = arith.addf %2, %4 : vector<40x128xf32>
    %cst_5 = arith.constant 0.000000e+00 : f32
    %6 = vector.broadcast %cst_5 : f32 to vector<40x128xf32>
    %7 = arith.maximumf %5, %6 : vector<40x128xf32>
    %c0_6 = arith.constant 0 : index
    %c0_7 = arith.constant 0 : index
    %8 = vector.load %arg4[%c0_6, %c0_7] : memref<128x128xf32, #tpu.memory_space<vmem>>, vector<128x128xf32>
    %cst_8 = arith.constant dense<0.000000e+00> : vector<40x128xf32>
    %9 = tpu.matmul %7, %8, %cst_8 {dimension_numbers = #tpu.dot_dimension_numbers<[1], [0], [0], [1], [0, 0, 1, 1], [], []>} : vector<40x128xf32>, vector<128x128xf32>, vector<40x128xf32> -> vector<40x128xf32>
    %c0_9 = arith.constant 0 : index
    %c0_10 = arith.constant 0 : index
    %10 = vector.load %arg5[%c0_9, %c0_10] : memref<1x128xf32, #tpu.memory_space<vmem>>, vector<1x128xf32>
    %11 = vector.broadcast %10 : vector<1x128xf32> to vector<40x128xf32>
    %12 = arith.addf %9, %11 : vector<40x128xf32>
    %cst_11 = arith.constant 0.000000e+00 : f32
    %13 = vector.broadcast %cst_11 : f32 to vector<40x128xf32>
    %14 = arith.maximumf %12, %13 : vector<40x128xf32>
    %c0_12 = arith.constant 0 : index
    %c0_13 = arith.constant 0 : index
    %15 = vector.load %arg6[%c0_12, %c0_13] : memref<128x128xf32, #tpu.memory_space<vmem>>, vector<128x128xf32>
    %cst_14 = arith.constant dense<0.000000e+00> : vector<40x128xf32>
    %16 = tpu.matmul %14, %15, %cst_14 {dimension_numbers = #tpu.dot_dimension_numbers<[1], [0], [0], [1], [0, 0, 1, 1], [], []>} : vector<40x128xf32>, vector<128x128xf32>, vector<40x128xf32> -> vector<40x128xf32>
    %c0_15 = arith.constant 0 : index
    %c0_16 = arith.constant 0 : index
    %17 = vector.load %arg7[%c0_15, %c0_16] : memref<1x128xf32, #tpu.memory_space<vmem>>, vector<1x128xf32>
    %18 = vector.broadcast %17 : vector<1x128xf32> to vector<40x128xf32>
    %19 = arith.addf %16, %18 : vector<40x128xf32>
    %cst_17 = arith.constant 0.000000e+00 : f32
    %20 = vector.broadcast %cst_17 : f32 to vector<40x128xf32>
    %21 = arith.maximumf %19, %20 : vector<40x128xf32>
    %c0_18 = arith.constant 0 : index
    %c0_19 = arith.constant 0 : index
    %22 = vector.load %arg8[%c0_18, %c0_19] : memref<128x256xf32, #tpu.memory_space<vmem>>, vector<128x256xf32>
    %cst_20 = arith.constant dense<0.000000e+00> : vector<40x256xf32>
    %23 = tpu.matmul %21, %22, %cst_20 {dimension_numbers = #tpu.dot_dimension_numbers<[1], [0], [0], [1], [0, 0, 1, 1], [], []>} : vector<40x128xf32>, vector<128x256xf32>, vector<40x256xf32> -> vector<40x256xf32>
    %c0_21 = arith.constant 0 : index
    %c0_22 = arith.constant 0 : index
    %24 = vector.load %arg9[%c0_21, %c0_22] : memref<1x256xf32, #tpu.memory_space<vmem>>, vector<1x256xf32>
    %25 = vector.broadcast %24 : vector<1x256xf32> to vector<40x256xf32>
    %26 = arith.addf %23, %25 : vector<40x256xf32>
    %c0_23 = arith.constant 0 : index
    %c0_24 = arith.constant 0 : index
    %27 = vector.load %arg10[%c0_23, %c0_24] : memref<40x256xf32, #tpu.memory_space<vmem>>, vector<40x256xf32>
    tpu.vector_store %arg10[%c0_23, %c0_24], %26 {strides = array<i32>} : memref<40x256xf32, #tpu.memory_space<vmem>>, vector<40x256xf32>,
    return
  }
  func.func @transform_0(%arg0: i32) -> (i32, i32) {
    %c0_i32 = arith.constant 0 : i32
    %c0_i32_0 = arith.constant 0 : i32
    return %arg0, %c0_i32 : i32, i32
  }
  func.func @transform_1(%arg0: i32) -> (i32, i32) {
    %c0_i32 = arith.constant 0 : i32
    %c0_i32_0 = arith.constant 0 : i32
    %c0_i32_1 = arith.constant 0 : i32
    return %c0_i32, %c0_i32_0 : i32, i32
  }
  func.func @transform_2(%arg0: i32) -> (i32, i32) {
    %c0_i32 = arith.constant 0 : i32
    %c0_i32_0 = arith.constant 0 : i32
    %c0_i32_1 = arith.constant 0 : i32
    return %c0_i32, %c0_i32_0 : i32, i32
  }
  func.func @transform_3(%arg0: i32) -> (i32, i32) {
    %c0_i32 = arith.constant 0 : i32
    %c0_i32_0 = arith.constant 0 : i32
    %c0_i32_1 = arith.constant 0 : i32
    return %c0_i32, %c0_i32_0 : i32, i32
  }
  func.func @transform_4(%arg0: i32) -> (i32, i32) {
    %c0_i32 = arith.constant 0 : i32
    %c0_i32_0 = arith.constant 0 : i32
    %c0_i32_1 = arith.constant 0 : i32
    return %c0_i32, %c0_i32_0 : i32, i32
  }
  func.func @transform_5(%arg0: i32) -> (i32, i32) {
    %c0_i32 = arith.constant 0 : i32
    %c0_i32_0 = arith.constant 0 : i32
    %c0_i32_1 = arith.constant 0 : i32
    return %c0_i32, %c0_i32_0 : i32, i32
  }
  func.func @transform_6(%arg0: i32) -> (i32, i32) {
    %c0_i32 = arith.constant 0 : i32
    %c0_i32_0 = arith.constant 0 : i32
    %c0_i32_1 = arith.constant 0 : i32
    return %c0_i32, %c0_i32_0 : i32, i32
  }
  func.func @transform_7(%arg0: i32) -> (i32, i32) {
    %c0_i32 = arith.constant 0 : i32
    %c0_i32_0 = arith.constant 0 : i32
    %c0_i32_1 = arith.constant 0 : i32
    return %c0_i32, %c0_i32_0 : i32, i32
  }
  func.func @transform_8(%arg0: i32) -> (i32, i32) {
    %c0_i32 = arith.constant 0 : i32
    %c0_i32_0 = arith.constant 0 : i32
    %c0_i32_1 = arith.constant 0 : i32
    return %c0_i32, %c0_i32_0 : i32, i32
  }
  func.func @transform_9(%arg0: i32) -> (i32, i32) {
    %c0_i32 = arith.constant 0 : i32
    %c0_i32_0 = arith.constant 0 : i32
    return %arg0, %c0_i32 : i32, i32
  }
}

module attributes {stable_mosaic.version = 11 : i64} {
  func.func @_mlp_kernel(%arg0: i32, %arg1: memref<40x256xf32, #tpu.memory_space<vmem>>, %arg2: memref<256x128xf32, #tpu.memory_space<vmem>>, %arg3: memref<1x128xf32, #tpu.memory_space<vmem>>, %arg4: memref<128x128xf32, #tpu.memory_space<vmem>>, %arg5: memref<1x128xf32, #tpu.memory_space<vmem>>, %arg6: memref<128x128xf32, #tpu.memory_space<vmem>>, %arg7: memref<1x128xf32, #tpu.memory_space<vmem>>, %arg8: memref<128x256xf32, #tpu.memory_space<vmem>>, %arg9: memref<1x256xf32, #tpu.memory_space<vmem>>, %arg10: memref<40x256xf32, #tpu.memory_space<vmem>>) attributes {dimension_semantics = [#tpu.dimension_semantics<parallel>], iteration_bounds = array<i64: 1>, scalar_prefetch = 0 : i64, scratch_operands = 0 : i64, tpu.core_type = #tpu.core_type<tc>, window_params = [{transform_indices = @transform_0, window_bounds = array<i64: 40, 256>}, {pipeline_mode = #tpu.pipeline_mode<synchronous>, transform_indices = @transform_1, window_bounds = array<i64: 256, 128>}, {pipeline_mode = #tpu.pipeline_mode<synchronous>, transform_indices = @transform_2, window_bounds = array<i64: 1, 128>}, {pipeline_mode = #tpu.pipeline_mode<synchronous>, transform_indices = @transform_3, window_bounds = array<i64: 128, 128>}, {pipeline_mode = #tpu.pipeline_mode<synchronous>, transform_indices = @transform_4, window_bounds = array<i64: 1, 128>}, {pipeline_mode = #tpu.pipeline_mode<synchronous>, transform_indices = @transform_5, window_bounds = array<i64: 128, 128>}, {pipeline_mode = #tpu.pipeline_mode<synchronous>, transform_indices = @transform_6, window_bounds = array<i64: 1, 128>}, {pipeline_mode = #tpu.pipeline_mode<synchronous>, transform_indices = @transform_7, window_bounds = array<i64: 128, 256>}, {pipeline_mode = #tpu.pipeline_mode<synchronous>, transform_indices = @transform_8, window_bounds = array<i64: 1, 256>}, {transform_indices = @transform_9, window_bounds = array<i64: 40, 256>}]} {
    %c0 = arith.constant 0 : index
    %c0_0 = arith.constant 0 : index
    %0 = vector.load %arg1[%c0, %c0_0] : memref<40x256xf32, #tpu.memory_space<vmem>>, vector<40x256xf32>
    %c0_1 = arith.constant 0 : index
    %c0_2 = arith.constant 0 : index
    %1 = vector.load %arg2[%c0_1, %c0_2] : memref<256x128xf32, #tpu.memory_space<vmem>>, vector<256x128xf32>
    %cst = arith.constant dense<0.000000e+00> : vector<40x128xf32>
    %2 = tpu.matmul %0, %1, %cst {dimension_numbers = #tpu.dot_dimension_numbers<[1], [0], [0], [1], [0, 0, 1, 1], [], []>} : vector<40x256xf32>, vector<256x128xf32>, vector<40x128xf32> -> vector<40x128xf32>
    %c0_3 = arith.constant 0 : index
    %c0_4 = arith.constant 0 : index
    %3 = vector.load %arg3[%c0_3, %c0_4] : memref<1x128xf32, #tpu.memory_space<vmem>>, vector<1x128xf32>
    %4 = vector.broadcast %3 : vector<1x128xf32> to vector<40x128xf32>
    %5 = arith.addf %2, %4 : vector<40x128xf32>
    %cst_5 = arith.constant 0.000000e+00 : f32
    %6 = vector.broadcast %cst_5 : f32 to vector<40x128xf32>
    %7 = arith.maximumf %5, %6 : vector<40x128xf32>
    %c0_6 = arith.constant 0 : index
    %c0_7 = arith.constant 0 : index
    %8 = vector.load %arg4[%c0_6, %c0_7] : memref<128x128xf32, #tpu.memory_space<vmem>>, vector<128x128xf32>
    %cst_8 = arith.constant dense<0.000000e+00> : vector<40x128xf32>
    %9 = tpu.matmul %7, %8, %cst_8 {dimension_numbers = #tpu.dot_dimension_numbers<[1], [0], [0], [1], [0, 0, 1, 1], [], []>} : vector<40x128xf32>, vector<128x128xf32>, vector<40x128xf32> -> vector<40x128xf32>
    %c0_9 = arith.constant 0 : index
    %c0_10 = arith.constant 0 : index
    %10 = vector.load %arg5[%c0_9, %c0_10] : memref<1x128xf32, #tpu.memory_space<vmem>>, vector<1x128xf32>
    %11 = vector.broadcast %10 : vector<1x128xf32> to vector<40x128xf32>
    %12 = arith.addf %9, %11 : vector<40x128xf32>
    %cst_11 = arith.constant 0.000000e+00 : f32
    %13 = vector.broadcast %cst_11 : f32 to vector<40x128xf32>
    %14 = arith.maximumf %12, %13 : vector<40x128xf32>
    %c0_12 = arith.constant 0 : index
    %c0_13 = arith.constant 0 : index
    %15 = vector.load %arg6[%c0_12, %c0_13] : memref<128x128xf32, #tpu.memory_space<vmem>>, vector<128x128xf32>
    %cst_14 = arith.constant dense<0.000000e+00> : vector<40x128xf32>
    %16 = tpu.matmul %14, %15, %cst_14 {dimension_numbers = #tpu.dot_dimension_numbers<[1], [0], [0], [1], [0, 0, 1, 1], [], []>} : vector<40x128xf32>, vector<128x128xf32>, vector<40x128xf32> -> vector<40x128xf32>
    %c0_15 = arith.constant 0 : index
    %c0_16 = arith.constant 0 : index
    %17 = vector.load %arg7[%c0_15, %c0_16] : memref<1x128xf32, #tpu.memory_space<vmem>>, vector<1x128xf32>
    %18 = vector.broadcast %17 : vector<1x128xf32> to vector<40x128xf32>
    %19 = arith.addf %16, %18 : vector<40x128xf32>
    %cst_17 = arith.constant 0.000000e+00 : f32
    %20 = vector.broadcast %cst_17 : f32 to vector<40x128xf32>
    %21 = arith.maximumf %19, %20 : vector<40x128xf32>
    %c0_18 = arith.constant 0 : index
    %c0_19 = arith.constant 0 : index
    %22 = vector.load %arg8[%c0_18, %c0_19] : memref<128x256xf32, #tpu.memory_space<vmem>>, vector<128x256xf32>
    %cst_20 = arith.constant dense<0.000000e+00> : vector<40x256xf32>
    %23 = tpu.matmul %21, %22, %cst_20 {dimension_numbers = #tpu.dot_dimension_numbers<[1], [0], [0], [1], [0, 0, 1, 1], [], []>} : vector<40x128xf32>, vector<128x256xf32>, vector<40x256xf32> -> vector<40x256xf32>
    %c0_21 = arith.constant 0 : index
    %c0_22 = arith.constant 0 : index
    %24 = vector.load %arg9[%c0_21, %c0_22] : memref<1x256xf32, #tpu.memory_space<vmem>>, vector<1x256xf32>
    %25 = vector.broadcast %24 : vector<1x256xf32> to vector<40x256xf32>
    %26 = arith.addf %23, %25 : vector<40x256xf32>
    %c0_23 = arith.constant 0 : index
    %c0_24 = arith.constant 0 : index
    %27 = vector.load %arg10[%c0_23, %c0_24] : memref<40x256xf32, #tpu.memory_space<vmem>>, vector<40x256xf32>
    tpu.vector_store %arg10[%c0_23, %c0_24], %26 {strides = array<i32>} : memref<40x256xf32, #tpu.memory_space<vmem>>, vector<40x256xf32>,
    return
  }
  func.func @transform_0(%arg0: i32) -> (i32, i32) {
    %c0_i32 = arith.constant 0 : i32
    %c0_i32_0 = arith.constant 0 : i32
    return %arg0, %c0_i32 : i32, i32
  }
  func.func @transform_1(%arg0: i32) -> (i32, i32) {
    %c0_i32 = arith.constant 0 : i32
    %c0_i32_0 = arith.constant 0 : i32
    %c0_i32_1 = arith.constant 0 : i32
    return %c0_i32, %c0_i32_0 : i32, i32
  }
  func.func @transform_2(%arg0: i32) -> (i32, i32) {
    %c0_i32 = arith.constant 0 : i32
    %c0_i32_0 = arith.constant 0 : i32
    %c0_i32_1 = arith.constant 0 : i32
    return %c0_i32, %c0_i32_0 : i32, i32
  }
  func.func @transform_3(%arg0: i32) -> (i32, i32) {
    %c0_i32 = arith.constant 0 : i32
    %c0_i32_0 = arith.constant 0 : i32
    %c0_i32_1 = arith.constant 0 : i32
    return %c0_i32, %c0_i32_0 : i32, i32
  }
  func.func @transform_4(%arg0: i32) -> (i32, i32) {
    %c0_i32 = arith.constant 0 : i32
    %c0_i32_0 = arith.constant 0 : i32
    %c0_i32_1 = arith.constant 0 : i32
    return %c0_i32, %c0_i32_0 : i32, i32
  }
  func.func @transform_5(%arg0: i32) -> (i32, i32) {
    %c0_i32 = arith.constant 0 : i32
    %c0_i32_0 = arith.constant 0 : i32
    %c0_i32_1 = arith.constant 0 : i32
    return %c0_i32, %c0_i32_0 : i32, i32
  }
  func.func @transform_6(%arg0: i32) -> (i32, i32) {
    %c0_i32 = arith.constant 0 : i32
    %c0_i32_0 = arith.constant 0 : i32
    %c0_i32_1 = arith.constant 0 : i32
    return %c0_i32, %c0_i32_0 : i32, i32
  }
  func.func @transform_7(%arg0: i32) -> (i32, i32) {
    %c0_i32 = arith.constant 0 : i32
    %c0_i32_0 = arith.constant 0 : i32
    %c0_i32_1 = arith.constant 0 : i32
    return %c0_i32, %c0_i32_0 : i32, i32
  }
  func.func @transform_8(%arg0: i32) -> (i32, i32) {
    %c0_i32 = arith.constant 0 : i32
    %c0_i32_0 = arith.constant 0 : i32
    %c0_i32_1 = arith.constant 0 : i32
    return %c0_i32, %c0_i32_0 : i32, i32
  }
  func.func @transform_9(%arg0: i32) -> (i32, i32) {
    %c0_i32 = arith.constant 0 : i32
    %c0_i32_0 = arith.constant 0 : i32
    return %arg0, %c0_i32 : i32, i32
  }
}

</mosaic_0001>

<llo_original>
// kernel: tpu_custom_call.1
$region0: #{tpu_custom_call.1}
  #allocation0 [shape = 'u32[]', space=smem, size = 0x4, offset = 0x4, fixed_abs, tag = 'smem constant byte address 0x4 - core index']
  #allocation1 [shape = 'u32[144,128]{1,0:T(1,128)}', space=vmem, size = 0x12000, scoped, tag = 'internal scratch']
  %s0 = inlined_call_operand.hbm [shape: f32[40,256], index: 0, kind: input, shape index: {}]
  %s1 = inlined_call_operand.hbm [shape: f32[256,128], index: 1, kind: input, shape index: {}]
  %s2 = inlined_call_operand.vmem [shape: f32[1,128], index: 2, kind: input, shape index: {}]
  %s3 = inlined_call_operand.hbm [shape: f32[128,128], index: 3, kind: input, shape index: {}]
  %s4 = inlined_call_operand.vmem [shape: f32[1,128], index: 4, kind: input, shape index: {}]
  %s5 = inlined_call_operand.hbm [shape: f32[128,128], index: 5, kind: input, shape index: {}]
  %s6 = inlined_call_operand.vmem [shape: f32[1,128], index: 6, kind: input, shape index: {}]
  %s7 = inlined_call_operand.hbm [shape: f32[128,256], index: 7, kind: input, shape index: {}]
  %s8 = inlined_call_operand.vmem [shape: f32[1,256], index: 8, kind: input, shape index: {}]
  %s9 = inlined_call_operand.hbm [shape: f32[40,256], index: 9, kind: output, shape index: {}]
  %s10 = sld [smem:[#allocation0]]
  $region66: #{tpu_custom_call.1} parent=0
    _
  %s12 = ssub.s32 1, %s10
  %s13 = scalar_select 0, %s12, %s10
  $region1: #{tpu_custom_call.1} parent=0
    #allocation2 [shape = 'u8[40960]{0}', space=vmem, size = 0xa000, scoped, tag = 'input window, operand 0, single buffered']
    #allocation3 [shape = 's32[1]{0}', space=sflag, size = 0x4, scoped, tag = 'scoped memory for tpu_custom_call.1']
    #allocation4 [shape = 's32[1]{0}', space=sflag, size = 0x4, scoped, tag = 'scoped memory for tpu_custom_call.1']
    #allocation5 [shape = 'u8[131072]{0}', space=vmem, size = 0x20000, scoped, tag = 'input window, operand 1, single buffered']
    #allocation6 [shape = 's32[1]{0}', space=sflag, size = 0x4, scoped, tag = 'scoped memory for tpu_custom_call.1']
    #allocation7 [shape = 'u8[65536]{0}', space=vmem, size = 0x10000, scoped, tag = 'input window, operand 3, single buffered']
    #allocation8 [shape = 'u8[65536]{0}', space=vmem, size = 0x10000, scoped, tag = 'input window, operand 5, single buffered']
    #allocation9 [shape = 's32[1]{0}', space=sflag, size = 0x4, scoped, tag = 'scoped memory for tpu_custom_call.1']
    #allocation10 [shape = 'u8[131072]{0}', space=vmem, size = 0x20000, scoped, tag = 'input window, operand 7, single buffered']
    #allocation11 [shape = 'u8[40960]{0}', space=vmem, size = 0xa000, scoped, tag = 'output window, operand 0, single buffered']
    %14 = vsyncpa [#allocation3], 0
    %15 = vsyncpa [#allocation6], 0
    %16 = vsyncpa [#allocation9], 0
    %17 = vsyncpa [#allocation4], 0
    // Predicated region
    $region2: #{tpu_custom_call.1} parent=1 // pred_check
      _
    $region3: #{tpu_custom_call.1} parent=1 // pred_check_branch
      %19 = sbr.rel (0) target = $region5
    $region4: #{tpu_custom_call.1} parent=1 // pred_region
      %s21 = ssub.s32 1280, 1280
      %22 = vsyncadd [#allocation3], %s21
      %s23 = sshll.u32 [#allocation2], 4
      %s24 = int_to_ptr.vmem [resolvable:$true] %s23
      %29 = dma.hbm_to_vmem [thread:$0]  %s0, 1280, %s24, [#allocation3], 256, 256, 16
    $region5: #{tpu_custom_call.1} parent=1 // pred_fallthru
      _
    // Predicated region
    $region6: #{tpu_custom_call.1} parent=1 // pred_check
      _
    $region7: #{tpu_custom_call.1} parent=1 // pred_check_branch
      %31 = sbr.rel (0) target = $region9
    $region8: #{tpu_custom_call.1} parent=1 // pred_region
      %s33 = ssub.s32 4096, 4096
      %34 = vsyncadd [#allocation6], %s33
      %s35 = sshll.u32 [#allocation5], 4
      %s36 = int_to_ptr.vmem [resolvable:$true] %s35
      %41 = dma.hbm_to_vmem [thread:$0]  %s1, 4096, %s36, [#allocation6], 128, 128, 8
    $region9: #{tpu_custom_call.1} parent=1 // pred_fallthru
      _
    // Predicated region
    $region10: #{tpu_custom_call.1} parent=1 // pred_check
      _
    $region11: #{tpu_custom_call.1} parent=1 // pred_check_branch
      %43 = sbr.rel (0) target = $region13
    $region12: #{tpu_custom_call.1} parent=1 // pred_region
      _
    $region13: #{tpu_custom_call.1} parent=1 // pred_fallthru
      _
    // Predicated region
    $region14: #{tpu_custom_call.1} parent=1 // pred_check
      _
    $region15: #{tpu_custom_call.1} parent=1 // pred_check_branch
      %45 = sbr.rel (0) target = $region17
    $region16: #{tpu_custom_call.1} parent=1 // pred_region
      %s47 = ssub.s32 2048, 2048
      %48 = vsyncadd [#allocation6], %s47
      %s49 = sshll.u32 [#allocation7], 4
      %s50 = int_to_ptr.vmem [resolvable:$true] %s49
      %55 = dma.hbm_to_vmem [thread:$0]  %s3, 2048, %s50, [#allocation6], 128, 128, 8
    $region17: #{tpu_custom_call.1} parent=1 // pred_fallthru
      _
    // Predicated region
    $region18: #{tpu_custom_call.1} parent=1 // pred_check
      _
    $region19: #{tpu_custom_call.1} parent=1 // pred_check_branch
      %57 = sbr.rel (0) target = $region21
    $region20: #{tpu_custom_call.1} parent=1 // pred_region
      _
    $region21: #{tpu_custom_call.1} parent=1 // pred_fallthru
      _
    // Predicated region
    $region22: #{tpu_custom_call.1} parent=1 // pred_check
      _
    $region23: #{tpu_custom_call.1} parent=1 // pred_check_branch
      %59 = sbr.rel (0) target = $region25
    $region24: #{tpu_custom_call.1} parent=1 // pred_region
      %s61 = ssub.s32 2048, 2048
      %62 = vsyncadd [#allocation9], %s61
      %s63 = sshll.u32 [#allocation8], 4
      %s64 = int_to_ptr.vmem [resolvable:$true] %s63
      %69 = dma.hbm_to_vmem [thread:$0]  %s5, 2048, %s64, [#allocation9], 128, 128, 8
    $region25: #{tpu_custom_call.1} parent=1 // pred_fallthru
      _
    // Predicated region
    $region26: #{tpu_custom_call.1} parent=1 // pred_check
      _
    $region27: #{tpu_custom_call.1} parent=1 // pred_check_branch
      %71 = sbr.rel (0) target = $region29
    $region28: #{tpu_custom_call.1} parent=1 // pred_region
      _
    $region29: #{tpu_custom_call.1} parent=1 // pred_fallthru
      _
    // Predicated region
    $region30: #{tpu_custom_call.1} parent=1 // pred_check
      _
    $region31: #{tpu_custom_call.1} parent=1 // pred_check_branch
      %73 = sbr.rel (0) target = $region33
    $region32: #{tpu_custom_call.1} parent=1 // pred_region
      %s75 = ssub.s32 4096, 4096
      %76 = vsyncadd [#allocation9], %s75
      %s77 = sshll.u32 [#allocation10], 4
      %s78 = int_to_ptr.vmem [resolvable:$true] %s77
      %83 = dma.hbm_to_vmem [thread:$0]  %s7, 4096, %s78, [#allocation9], 256, 256, 16
    $region33: #{tpu_custom_call.1} parent=1 // pred_fallthru
      _
    // Predicated region
    $region34: #{tpu_custom_call.1} parent=1 // pred_check
      _
    $region35: #{tpu_custom_call.1} parent=1 // pred_check_branch
      %85 = sbr.rel (0) target = $region37
    $region36: #{tpu_custom_call.1} parent=1 // pred_region
      _
    $region37: #{tpu_custom_call.1} parent=1 // pred_fallthru
      _
    // Predicated region
    $region38: #{tpu_custom_call.1} parent=1 // pred_check
      _
    $region39: #{tpu_custom_call.1} parent=1 // pred_check_branch
      %87 = sbr.rel (0) target = $region41
    $region40: #{tpu_custom_call.1} parent=1 // pred_region
      %88 = dma.done [#allocation3], 1280
    $region41: #{tpu_custom_call.1} parent=1 // pred_fallthru
      _
    // Predicated region
    $region42: #{tpu_custom_call.1} parent=1 // pred_check
      _
    $region43: #{tpu_custom_call.1} parent=1 // pred_check_branch
      %90 = sbr.rel (0) target = $region45
    $region44: #{tpu_custom_call.1} parent=1 // pred_region
      %91 = dma.done [#allocation6], 4096
    $region45: #{tpu_custom_call.1} parent=1 // pred_fallthru
      _
    // Predicated region
    $region46: #{tpu_custom_call.1} parent=1 // pred_check
      _
    $region47: #{tpu_custom_call.1} parent=1 // pred_check_branch
      %93 = sbr.rel (0) target = $region49
    $region48: #{tpu_custom_call.1} parent=1 // pred_region
      %94 = dma.done [#allocation6], 2048
    $region49: #{tpu_custom_call.1} parent=1 // pred_fallthru
      _
    // Predicated region
    $region50: #{tpu_custom_call.1} parent=1 // pred_check
      _
    $region51: #{tpu_custom_call.1} parent=1 // pred_check_branch
      %96 = sbr.rel (0) target = $region53
    $region52: #{tpu_custom_call.1} parent=1 // pred_region
      %97 = dma.done [#allocation9], 2048
    $region53: #{tpu_custom_call.1} parent=1 // pred_fallthru
      _
    // Predicated region
    $region54: #{tpu_custom_call.1} parent=1 // pred_check
      _
    $region55: #{tpu_custom_call.1} parent=1 // pred_check_branch
      %99 = sbr.rel (0) target = $region57
    $region56: #{tpu_custom_call.1} parent=1 // pred_region
      %100 = dma.done [#allocation9], 4096
    $region57: #{tpu_custom_call.1} parent=1 // pred_fallthru
      _
    %v101 = vld [vmem:[#allocation2] sm:$0xff]
    %v102 = vld [vmem:[#allocation2 + $0x8] sm:$0xff]
    %v103 = vld [vmem:[#allocation2 + $0x10] sm:$0xff]
    %v104 = vld [vmem:[#allocation2 + $0x18] sm:$0xff]
    %v105 = vld [vmem:[#allocation2 + $0x20] sm:$0xff]
    %v106 = vld [vmem:[#allocation2 + $0x28] sm:$0xff]
    %v107 = vld [vmem:[#allocation2 + $0x30] sm:$0xff]
    %v108 = vld [vmem:[#allocation2 + $0x38] sm:$0xff]
    %v109 = vld [vmem:[#allocation2 + $0x40] sm:$0xff]
    %v110 = vld [vmem:[#allocation2 + $0x48] sm:$0xff]
    %v111 = vld [vmem:[#allocation5] sm:$0xff]
    %v112 = vld [vmem:[#allocation5 + $0x8] sm:$0xff]
    %v113 = vld [vmem:[#allocation5 + $0x10] sm:$0xff]
    %v114 = vld [vmem:[#allocation5 + $0x18] sm:$0xff]
    %v115 = vld [vmem:[#allocation5 + $0x20] sm:$0xff]
    %v116 = vld [vmem:[#allocation5 + $0x28] sm:$0xff]
    %v117 = vld [vmem:[#allocation5 + $0x30] sm:$0xff]
    %v118 = vld [vmem:[#allocation5 + $0x38] sm:$0xff]
    %v119 = vld [vmem:[#allocation5 + $0x40] sm:$0xff]
    %v120 = vld [vmem:[#allocation5 + $0x48] sm:$0xff]
    %v121 = vld [vmem:[#allocation5 + $0x50] sm:$0xff]
    %v122 = vld [vmem:[#allocation5 + $0x58] sm:$0xff]
    %v123 = vld [vmem:[#allocation5 + $0x60] sm:$0xff]
    %v124 = vld [vmem:[#allocation5 + $0x68] sm:$0xff]
    %v125 = vld [vmem:[#allocation5 + $0x70] sm:$0xff]
    %v126 = vld [vmem:[#allocation5 + $0x78] sm:$0xff]
    %v127 = vld [vmem:[#allocation5 + $0x80] sm:$0xff]
    %v128 = vld [vmem:[#allocation5 + $0x88] sm:$0xff]
    %v129 = vld [vmem:[#allocation5 + $0x90] sm:$0xff]
    %v130 = vld [vmem:[#allocation5 + $0x98] sm:$0xff]
    %v131 = vld [vmem:[#allocation5 + $0xa0] sm:$0xff]
    %v132 = vld [vmem:[#allocation5 + $0xa8] sm:$0xff]
    %v133 = vld [vmem:[#allocation5 + $0xb0] sm:$0xff]
    %v134 = vld [vmem:[#allocation5 + $0xb8] sm:$0xff]
    %v135 = vld [vmem:[#allocation5 + $0xc0] sm:$0xff]
    %v136 = vld [vmem:[#allocation5 + $0xc8] sm:$0xff]
    %v137 = vld [vmem:[#allocation5 + $0xd0] sm:$0xff]
    %v138 = vld [vmem:[#allocation5 + $0xd8] sm:$0xff]
    %v139 = vld [vmem:[#allocation5 + $0xe0] sm:$0xff]
    %v140 = vld [vmem:[#allocation5 + $0xe8] sm:$0xff]
    %v141 = vld [vmem:[#allocation5 + $0xf0] sm:$0xff]
    %v142 = vld [vmem:[#allocation5 + $0xf8] sm:$0xff]
    %v143 = vld [vmem:[%s2] sm:$0x1]
    %v145 = vlaneseq
    %v146 = vshrl.u32 %v145, 7
    %v147 = vsub.s32 0, %v146
    %v148 = vrot.slane %v143, %v147
    %150 = vmatprep.subr.mxu0 0.0
    %151 = vmatpush1.msra.mxu0 %v126
    %152 = vmatprep.subr.mxu0 0.0
    %153 = vmatpush1.msra.mxu0 %v125
    %154 = vmatprep.subr.mxu0 0.0
    %155 = vmatpush1.msra.mxu0 %v124
    %156 = vmatprep.subr.mxu0 0.0
    %157 = vmatpush1.msra.mxu0 %v123
    %158 = vmatprep.subr.mxu0 0.0
    %159 = vmatpush1.msra.mxu0 %v122
    %160 = vmatprep.subr.mxu0 0.0
    %161 = vmatpush1.msra.mxu0 %v121
    %162 = vmatprep.subr.mxu0 0.0
    %163 = vmatpush1.msra.mxu0 %v120
    %164 = vmatprep.subr.mxu0 0.0
    %165 = vmatpush1.msra.mxu0 %v119
    %166 = vmatprep.subr.mxu0 0.0
    %167 = vmatpush1.msra.mxu0 %v118
    %168 = vmatprep.subr.mxu0 0.0
    %169 = vmatpush1.msra.mxu0 %v117
    %170 = vmatprep.subr.mxu0 0.0
    %171 = vmatpush1.msra.mxu0 %v116
    %172 = vmatprep.subr.mxu0 0.0
    %173 = vmatpush1.msra.mxu0 %v115
    %174 = vmatprep.subr.mxu0 0.0
    %175 = vmatpush1.msra.mxu0 %v114
    %176 = vmatprep.subr.mxu0 0.0
    %177 = vmatpush1.msra.mxu0 %v113
    %178 = vmatprep.subr.mxu0 0.0
    %179 = vmatpush1.msra.mxu0 %v112
    %180 = vmatprep.subr.mxu0 0.0
    %181 = vmatpush1.msra.mxu0 %v111
    %182 = vmatprep.subr.mxu0 0.0
    %183 = vmatpush2.msra.mxu0 %v142
    %184 = vmatprep.subr.mxu0 0.0
    %185 = vmatpush2.msra.mxu0 %v141
    %186 = vmatprep.subr.mxu0 0.0
    %187 = vmatpush2.msra.mxu0 %v140
    %188 = vmatprep.subr.mxu0 0.0
    %189 = vmatpush2.msra.mxu0 %v139
    %190 = vmatprep.subr.mxu0 0.0
    %191 = vmatpush2.msra.mxu0 %v138
    %192 = vmatprep.subr.mxu0 0.0
    %193 = vmatpush2.msra.mxu0 %v137
    %194 = vmatprep.subr.mxu0 0.0
    %195 = vmatpush2.msra.mxu0 %v136
    %196 = vmatprep.subr.mxu0 0.0
    %197 = vmatpush2.msra.mxu0 %v135
    %198 = vmatprep.subr.mxu0 0.0
    %199 = vmatpush2.msra.mxu0 %v134
    %200 = vmatprep.subr.mxu0 0.0
    %201 = vmatpush2.msra.mxu0 %v133
    %202 = vmatprep.subr.mxu0 0.0
    %203 = vmatpush2.msra.mxu0 %v132
    %204 = vmatprep.subr.mxu0 0.0
    %205 = vmatpush2.msra.mxu0 %v131
    %206 = vmatprep.subr.mxu0 0.0
    %207 = vmatpush2.msra.mxu0 %v130
    %208 = vmatprep.subr.mxu0 0.0
    %209 = vmatpush2.msra.mxu0 %v129
    %210 = vmatprep.subr.mxu0 0.0
    %211 = vmatpush2.msra.mxu0 %v128
    %212 = vmatprep.subr.mxu0 0.0
    %213 = vmatpush2.msra.mxu0 %v127
    %214 = vmatprep.mubr.f32.mxu0 %v102
    %215 = vmatmul.mubr.f32.gmra.mxu0 %v101
    %v216 = vpop.f32.mrf.mxu0
    %v217 = vadd.f32 %v148, %v216
    %v218 = vpop.f32.mrf.mxu0
    %219 = vmatprep.mubr.f32.mxu0 %v104
    %220 = vmatmul.mubr.f32.gmra.mxu0 %v103
    %v221 = vpop.f32.mrf.mxu0
    %v222 = vadd.f32 %v148, %v221
    %v223 = vpop.f32.mrf.mxu0
    %224 = vmatprep.mubr.f32.mxu0 %v106
    %225 = vmatmul.mubr.f32.gmra.mxu0 %v105
    %v226 = vpop.f32.mrf.mxu0
    %v227 = vadd.f32 %v148, %v226
    %v228 = vpop.f32.mrf.mxu0
    %229 = vmatprep.mubr.f32.mxu0 %v108
    %230 = vmatmul.mubr.f32.gmra.mxu0 %v107
    %v231 = vpop.f32.mrf.mxu0
    %v232 = vadd.f32 %v148, %v231
    %v233 = vpop.f32.mrf.mxu0
    %234 = vmatprep.mubr.f32.mxu0 %v110
    %235 = vmatmul.mubr.f32.gmra.mxu0 %v109
    %v236 = vpop.f32.mrf.mxu0
    %v237 = vadd.f32 %v148, %v236
    %v238 = vpop.f32.mrf.mxu0
    %239 = vdwg.mxu0
    %v240 = vmax.f32 %v217, 0.0
    %v241 = vmax.f32 %v222, 0.0
    %v242 = vmax.f32 %v227, 0.0
    %v243 = vmax.f32 %v232, 0.0
    %v244 = vmax.f32 %v237, 0.0
    %v245 = vld [vmem:[#allocation7] sm:$0xff]
    %v246 = vld [vmem:[#allocation7 + $0x8] sm:$0xff]
    %v247 = vld [vmem:[#allocation7 + $0x10] sm:$0xff]
    %v248 = vld [vmem:[#allocation7 + $0x18] sm:$0xff]
    %v249 = vld [vmem:[#allocation7 + $0x20] sm:$0xff]
    %v250 = vld [vmem:[#allocation7 + $0x28] sm:$0xff]
    %v251 = vld [vmem:[#allocation7 + $0x30] sm:$0xff]
    %v252 = vld [vmem:[#allocation7 + $0x38] sm:$0xff]
    %v253 = vld [vmem:[#allocation7 + $0x40] sm:$0xff]
    %v254 = vld [vmem:[#allocation7 + $0x48] sm:$0xff]
    %v255 = vld [vmem:[#allocation7 + $0x50] sm:$0xff]
    %v256 = vld [vmem:[#allocation7 + $0x58] sm:$0xff]
    %v257 = vld [vmem:[#allocation7 + $0x60] sm:$0xff]
    %v258 = vld [vmem:[#allocation7 + $0x68] sm:$0xff]
    %v259 = vld [vmem:[#allocation7 + $0x70] sm:$0xff]
    %v260 = vld [vmem:[#allocation7 + $0x78] sm:$0xff]
    %v261 = vld [vmem:[%s4] sm:$0x1]
    %v263 = vlaneseq
    %v264 = vshrl.u32 %v263, 7
    %v265 = vsub.s32 0, %v264
    %v266 = vrot.slane %v261, %v265
    %268 = vmatprep.subr.mxu0 0.0
    %269 = vmatpush1.msra.mxu0 %v260
    %270 = vmatprep.subr.mxu0 0.0
    %271 = vmatpush1.msra.mxu0 %v259
    %272 = vmatprep.subr.mxu0 0.0
    %273 = vmatpush1.msra.mxu0 %v258
    %274 = vmatprep.subr.mxu0 0.0
    %275 = vmatpush1.msra.mxu0 %v257
    %276 = vmatprep.subr.mxu0 0.0
    %277 = vmatpush1.msra.mxu0 %v256
    %278 = vmatprep.subr.mxu0 0.0
    %279 = vmatpush1.msra.mxu0 %v255
    %280 = vmatprep.subr.mxu0 0.0
    %281 = vmatpush1.msra.mxu0 %v254
    %282 = vmatprep.subr.mxu0 0.0
    %283 = vmatpush1.msra.mxu0 %v253
    %284 = vmatprep.subr.mxu0 0.0
    %285 = vmatpush1.msra.mxu0 %v252
    %286 = vmatprep.subr.mxu0 0.0
    %287 = vmatpush1.msra.mxu0 %v251
    %288 = vmatprep.subr.mxu0 0.0
    %289 = vmatpush1.msra.mxu0 %v250
    %290 = vmatprep.subr.mxu0 0.0
    %291 = vmatpush1.msra.mxu0 %v249
    %292 = vmatprep.subr.mxu0 0.0
    %293 = vmatpush1.msra.mxu0 %v248
    %294 = vmatprep.subr.mxu0 0.0
    %295 = vmatpush1.msra.mxu0 %v247
    %296 = vmatprep.subr.mxu0 0.0
    %297 = vmatpush1.msra.mxu0 %v246
    %298 = vmatprep.subr.mxu0 0.0
    %299 = vmatpush1.msra.mxu0 %v245
    %300 = vmatprep.subr.mxu0 0.0
    %301 = vmatpush2.msra.mxu0 0.0
    %302 = vmatprep.subr.mxu0 0.0
    %303 = vmatpush2.msra.mxu0 0.0
    %304 = vmatprep.subr.mxu0 0.0
    %305 = vmatpush2.msra.mxu0 0.0
    %306 = vmatprep.subr.mxu0 0.0
    %307 = vmatpush2.msra.mxu0 0.0
    %308 = vmatprep.subr.mxu0 0.0
    %309 = vmatpush2.msra.mxu0 0.0
    %310 = vmatprep.subr.mxu0 0.0
    %311 = vmatpush2.msra.mxu0 0.0
    %312 = vmatprep.subr.mxu0 0.0
    %313 = vmatpush2.msra.mxu0 0.0
    %314 = vmatprep.subr.mxu0 0.0
    %315 = vmatpush2.msra.mxu0 0.0
    %316 = vmatprep.subr.mxu0 0.0
    %317 = vmatpush2.msra.mxu0 0.0
    %318 = vmatprep.subr.mxu0 0.0
    %319 = vmatpush2.msra.mxu0 0.0
    %320 = vmatprep.subr.mxu0 0.0
    %321 = vmatpush2.msra.mxu0 0.0
    %322 = vmatprep.subr.mxu0 0.0
    %323 = vmatpush2.msra.mxu0 0.0
    %324 = vmatprep.subr.mxu0 0.0
    %325 = vmatpush2.msra.mxu0 0.0
    %326 = vmatprep.subr.mxu0 0.0
    %327 = vmatpush2.msra.mxu0 0.0
    %328 = vmatprep.subr.mxu0 0.0
    %329 = vmatpush2.msra.mxu0 0.0
    %330 = vmatprep.subr.mxu0 0.0
    %331 = vmatpush2.msra.mxu0 0.0
    %332 = vmatprep.mubr.f32.mxu0 0.0
    %333 = vmatmul.mubr.f32.gmra.mxu0 %v240
    %v334 = vpop.f32.mrf.mxu0
    %v335 = vadd.f32 %v266, %v334
    %v336 = vpop.f32.mrf.mxu0
    %337 = vmatprep.mubr.f32.mxu0 0.0
    %338 = vmatmul.mubr.f32.gmra.mxu0 %v241
    %v339 = vpop.f32.mrf.mxu0
    %v340 = vadd.f32 %v266, %v339
    %v341 = vpop.f32.mrf.mxu0
    %342 = vmatprep.mubr.f32.mxu0 0.0
    %343 = vmatmul.mubr.f32.gmra.mxu0 %v242
    %v344 = vpop.f32.mrf.mxu0
    %v345 = vadd.f32 %v266, %v344
    %v346 = vpop.f32.mrf.mxu0
    %347 = vmatprep.mubr.f32.mxu0 0.0
    %348 = vmatmul.mubr.f32.gmra.mxu0 %v243
    %v349 = vpop.f32.mrf.mxu0
    %v350 = vadd.f32 %v266, %v349
    %v351 = vpop.f32.mrf.mxu0
    %352 = vmatprep.mubr.f32.mxu0 0.0
    %353 = vmatmul.mubr.f32.gmra.mxu0 %v244
    %v354 = vpop.f32.mrf.mxu0
    %v355 = vadd.f32 %v266, %v354
    %v356 = vpop.f32.mrf.mxu0
    %357 = vdwg.mxu0
    %v358 = vmax.f32 %v335, 0.0
    %v359 = vmax.f32 %v340, 0.0
    %v360 = vmax.f32 %v345, 0.0
    %v361 = vmax.f32 %v350, 0.0
    %v362 = vmax.f32 %v355, 0.0
    %v363 = vld [vmem:[#allocation8] sm:$0xff]
    %v364 = vld [vmem:[#allocation8 + $0x8] sm:$0xff]
    %v365 = vld [vmem:[#allocation8 + $0x10] sm:$0xff]
    %v366 = vld [vmem:[#allocation8 + $0x18] sm:$0xff]
    %v367 = vld [vmem:[#allocation8 + $0x20] sm:$0xff]
    %v368 = vld [vmem:[#allocation8 + $0x28] sm:$0xff]
    %v369 = vld [vmem:[#allocation8 + $0x30] sm:$0xff]
    %v370 = vld [vmem:[#allocation8 + $0x38] sm:$0xff]
    %v371 = vld [vmem:[#allocation8 + $0x40] sm:$0xff]
    %v372 = vld [vmem:[#allocation8 + $0x48] sm:$0xff]
    %v373 = vld [vmem:[#allocation8 + $0x50] sm:$0xff]
    %v374 = vld [vmem:[#allocation8 + $0x58] sm:$0xff]
    %v375 = vld [vmem:[#allocation8 + $0x60] sm:$0xff]
    %v376 = vld [vmem:[#allocation8 + $0x68] sm:$0xff]
    %v377 = vld [vmem:[#allocation8 + $0x70] sm:$0xff]
    %v378 = vld [vmem:[#allocation8 + $0x78] sm:$0xff]
    %v379 = vld [vmem:[%s6] sm:$0x1]
    %v381 = vlaneseq
    %v382 = vshrl.u32 %v381, 7
    %v383 = vsub.s32 0, %v382
    %v384 = vrot.slane %v379, %v383
    %386 = vmatprep.subr.mxu0 0.0
    %387 = vmatpush1.msra.mxu0 %v378
    %388 = vmatprep.subr.mxu0 0.0
    %389 = vmatpush1.msra.mxu0 %v377
    %390 = vmatprep.subr.mxu0 0.0
    %391 = vmatpush1.msra.mxu0 %v376
    %392 = vmatprep.subr.mxu0 0.0
    %393 = vmatpush1.msra.mxu0 %v375
    %394 = vmatprep.subr.mxu0 0.0
    %395 = vmatpush1.msra.mxu0 %v374
    %396 = vmatprep.subr.mxu0 0.0
    %397 = vmatpush1.msra.mxu0 %v373
    %398 = vmatprep.subr.mxu0 0.0
    %399 = vmatpush1.msra.mxu0 %v372
    %400 = vmatprep.subr.mxu0 0.0
    %401 = vmatpush1.msra.mxu0 %v371
    %402 = vmatprep.subr.mxu0 0.0
    %403 = vmatpush1.msra.mxu0 %v370
    %404 = vmatprep.subr.mxu0 0.0
    %405 = vmatpush1.msra.mxu0 %v369
    %406 = vmatprep.subr.mxu0 0.0
    %407 = vmatpush1.msra.mxu0 %v368
    %408 = vmatprep.subr.mxu0 0.0
    %409 = vmatpush1.msra.mxu0 %v367
    %410 = vmatprep.subr.mxu0 0.0
    %411 = vmatpush1.msra.mxu0 %v366
    %412 = vmatprep.subr.mxu0 0.0
    %413 = vmatpush1.msra.mxu0 %v365
    %414 = vmatprep.subr.mxu0 0.0
    %415 = vmatpush1.msra.mxu0 %v364
    %416 = vmatprep.subr.mxu0 0.0
    %417 = vmatpush1.msra.mxu0 %v363
    %418 = vmatprep.subr.mxu0 0.0
    %419 = vmatpush2.msra.mxu0 0.0
    %420 = vmatprep.subr.mxu0 0.0
    %421 = vmatpush2.msra.mxu0 0.0
    %422 = vmatprep.subr.mxu0 0.0
    %423 = vmatpush2.msra.mxu0 0.0
    %424 = vmatprep.subr.mxu0 0.0
    %425 = vmatpush2.msra.mxu0 0.0
    %426 = vmatprep.subr.mxu0 0.0
    %427 = vmatpush2.msra.mxu0 0.0
    %428 = vmatprep.subr.mxu0 0.0
    %429 = vmatpush2.msra.mxu0 0.0
    %430 = vmatprep.subr.mxu0 0.0
    %431 = vmatpush2.msra.mxu0 0.0
    %432 = vmatprep.subr.mxu0 0.0
    %433 = vmatpush2.msra.mxu0 0.0
    %434 = vmatprep.subr.mxu0 0.0
    %435 = vmatpush2.msra.mxu0 0.0
    %436 = vmatprep.subr.mxu0 0.0
    %437 = vmatpush2.msra.mxu0 0.0
    %438 = vmatprep.subr.mxu0 0.0
    %439 = vmatpush2.msra.mxu0 0.0
    %440 = vmatprep.subr.mxu0 0.0
    %441 = vmatpush2.msra.mxu0 0.0
    %442 = vmatprep.subr.mxu0 0.0
    %443 = vmatpush2.msra.mxu0 0.0
    %444 = vmatprep.subr.mxu0 0.0
    %445 = vmatpush2.msra.mxu0 0.0
    %446 = vmatprep.subr.mxu0 0.0
    %447 = vmatpush2.msra.mxu0 0.0
    %448 = vmatprep.subr.mxu0 0.0
    %449 = vmatpush2.msra.mxu0 0.0
    %450 = vmatprep.mubr.f32.mxu0 0.0
    %451 = vmatmul.mubr.f32.gmra.mxu0 %v358
    %v452 = vpop.f32.mrf.mxu0
    %v453 = vadd.f32 %v384, %v452
    %v454 = vpop.f32.mrf.mxu0
    %455 = vmatprep.mubr.f32.mxu0 0.0
    %456 = vmatmul.mubr.f32.gmra.mxu0 %v359
    %v457 = vpop.f32.mrf.mxu0
    %v458 = vadd.f32 %v384, %v457
    %v459 = vpop.f32.mrf.mxu0
    %460 = vmatprep.mubr.f32.mxu0 0.0
    %461 = vmatmul.mubr.f32.gmra.mxu0 %v360
    %v462 = vpop.f32.mrf.mxu0
    %v463 = vadd.f32 %v384, %v462
    %v464 = vpop.f32.mrf.mxu0
    %465 = vmatprep.mubr.f32.mxu0 0.0
    %466 = vmatmul.mubr.f32.gmra.mxu0 %v361
    %v467 = vpop.f32.mrf.mxu0
    %v468 = vadd.f32 %v384, %v467
    %v469 = vpop.f32.mrf.mxu0
    %470 = vmatprep.mubr.f32.mxu0 0.0
    %471 = vmatmul.mubr.f32.gmra.mxu0 %v362
    %v472 = vpop.f32.mrf.mxu0
    %v473 = vadd.f32 %v384, %v472
    %v474 = vpop.f32.mrf.mxu0
    %475 = vdwg.mxu0
    %v476 = vmax.f32 %v453, 0.0
    %v477 = vmax.f32 %v458, 0.0
    %v478 = vmax.f32 %v463, 0.0
    %v479 = vmax.f32 %v468, 0.0
    %v480 = vmax.f32 %v473, 0.0
    %v481 = vld [vmem:[#allocation10] sm:$0xff]
    %v482 = vld [vmem:[#allocation10 + $0x8] sm:$0xff]
    %v483 = vld [vmem:[#allocation10 + $0x10] sm:$0xff]
    %v484 = vld [vmem:[#allocation10 + $0x18] sm:$0xff]
    %v485 = vld [vmem:[#allocation10 + $0x20] sm:$0xff]
    %v486 = vld [vmem:[#allocation10 + $0x28] sm:$0xff]
    %v487 = vld [vmem:[#allocation10 + $0x30] sm:$0xff]
    %v488 = vld [vmem:[#allocation10 + $0x38] sm:$0xff]
    %v489 = vld [vmem:[#allocation10 + $0x40] sm:$0xff]
    %v490 = vld [vmem:[#allocation10 + $0x48] sm:$0xff]
    %v491 = vld [vmem:[#allocation10 + $0x50] sm:$0xff]
    %v492 = vld [vmem:[#allocation10 + $0x58] sm:$0xff]
    %v493 = vld [vmem:[#allocation10 + $0x60] sm:$0xff]
    %v494 = vld [vmem:[#allocation10 + $0x68] sm:$0xff]
    %v495 = vld [vmem:[#allocation10 + $0x70] sm:$0xff]
    %v496 = vld [vmem:[#allocation10 + $0x78] sm:$0xff]
    %v497 = vld [vmem:[#allocation10 + $0x80] sm:$0xff]
    %v498 = vld [vmem:[#allocation10 + $0x88] sm:$0xff]
    %v499 = vld [vmem:[#allocation10 + $0x90] sm:$0xff]
    %v500 = vld [vmem:[#allocation10 + $0x98] sm:$0xff]
    %v501 = vld [vmem:[#allocation10 + $0xa0] sm:$0xff]
    %v502 = vld [vmem:[#allocation10 + $0xa8] sm:$0xff]
    %v503 = vld [vmem:[#allocation10 + $0xb0] sm:$0xff]
    %v504 = vld [vmem:[#allocation10 + $0xb8] sm:$0xff]
    %v505 = vld [vmem:[#allocation10 + $0xc0] sm:$0xff]
    %v506 = vld [vmem:[#allocation10 + $0xc8] sm:$0xff]
    %v507 = vld [vmem:[#allocation10 + $0xd0] sm:$0xff]
    %v508 = vld [vmem:[#allocation10 + $0xd8] sm:$0xff]
    %v509 = vld [vmem:[#allocation10 + $0xe0] sm:$0xff]
    %v510 = vld [vmem:[#allocation10 + $0xe8] sm:$0xff]
    %v511 = vld [vmem:[#allocation10 + $0xf0] sm:$0xff]
    %v512 = vld [vmem:[#allocation10 + $0xf8] sm:$0xff]
    %v513 = vld [vmem:[%s8] sm:$0x3]
    %v515 = vlaneseq
    %v516 = vshrl.u32 %v515, 7
    %v517 = vsub.s32 0, %v516
    %v518 = vrot.slane %v513, %v517
    %v519 = vlaneseq
    %v520 = vshrl.u32 %v519, 7
    %v521 = vsub.s32 1, %v520
    %v522 = vrot.slane %v513, %v521
    %525 = vmatprep.subr.mxu0 %v512
    %526 = vmatpush1.msra.mxu0 %v511
    %527 = vmatprep.subr.mxu0 %v510
    %528 = vmatpush1.msra.mxu0 %v509
    %529 = vmatprep.subr.mxu0 %v508
    %530 = vmatpush1.msra.mxu0 %v507
    %531 = vmatprep.subr.mxu0 %v506
    %532 = vmatpush1.msra.mxu0 %v505
    %533 = vmatprep.subr.mxu0 %v504
    %534 = vmatpush1.msra.mxu0 %v503
    %535 = vmatprep.subr.mxu0 %v502
    %536 = vmatpush1.msra.mxu0 %v501
    %537 = vmatprep.subr.mxu0 %v500
    %538 = vmatpush1.msra.mxu0 %v499
    %539 = vmatprep.subr.mxu0 %v498
    %540 = vmatpush1.msra.mxu0 %v497
    %541 = vmatprep.subr.mxu0 %v496
    %542 = vmatpush1.msra.mxu0 %v495
    %543 = vmatprep.subr.mxu0 %v494
    %544 = vmatpush1.msra.mxu0 %v493
    %545 = vmatprep.subr.mxu0 %v492
    %546 = vmatpush1.msra.mxu0 %v491
    %547 = vmatprep.subr.mxu0 %v490
    %548 = vmatpush1.msra.mxu0 %v489
    %549 = vmatprep.subr.mxu0 %v488
    %550 = vmatpush1.msra.mxu0 %v487
    %551 = vmatprep.subr.mxu0 %v486
    %552 = vmatpush1.msra.mxu0 %v485
    %553 = vmatprep.subr.mxu0 %v484
    %554 = vmatpush1.msra.mxu0 %v483
    %555 = vmatprep.subr.mxu0 %v482
    %556 = vmatpush1.msra.mxu0 %v481
    %557 = vmatprep.subr.mxu0 0.0
    %558 = vmatpush2.msra.mxu0 0.0
    %559 = vmatprep.subr.mxu0 0.0
    %560 = vmatpush2.msra.mxu0 0.0
    %561 = vmatprep.subr.mxu0 0.0
    %562 = vmatpush2.msra.mxu0 0.0
    %563 = vmatprep.subr.mxu0 0.0
    %564 = vmatpush2.msra.mxu0 0.0
    %565 = vmatprep.subr.mxu0 0.0
    %566 = vmatpush2.msra.mxu0 0.0
    %567 = vmatprep.subr.mxu0 0.0
    %568 = vmatpush2.msra.mxu0 0.0
    %569 = vmatprep.subr.mxu0 0.0
    %570 = vmatpush2.msra.mxu0 0.0
    %571 = vmatprep.subr.mxu0 0.0
    %572 = vmatpush2.msra.mxu0 0.0
    %573 = vmatprep.subr.mxu0 0.0
    %574 = vmatpush2.msra.mxu0 0.0
    %575 = vmatprep.subr.mxu0 0.0
    %576 = vmatpush2.msra.mxu0 0.0
    %577 = vmatprep.subr.mxu0 0.0
    %578 = vmatpush2.msra.mxu0 0.0
    %579 = vmatprep.subr.mxu0 0.0
    %580 = vmatpush2.msra.mxu0 0.0
    %581 = vmatprep.subr.mxu0 0.0
    %582 = vmatpush2.msra.mxu0 0.0
    %583 = vmatprep.subr.mxu0 0.0
    %584 = vmatpush2.msra.mxu0 0.0
    %585 = vmatprep.subr.mxu0 0.0
    %586 = vmatpush2.msra.mxu0 0.0
    %587 = vmatprep.subr.mxu0 0.0
    %588 = vmatpush2.msra.mxu0 0.0
    %589 = vmatprep.mubr.f32.mxu0 0.0
    %590 = vmatmul.mubr.f32.gmra.mxu0 %v476
    %v591 = vpop.f32.mrf.mxu0
    %v592 = vadd.f32 %v518, %v591
    %v593 = vpop.f32.mrf.mxu0
    %v594 = vadd.f32 %v522, %v593
    %595 = vmatprep.mubr.f32.mxu0 0.0
    %596 = vmatmul.mubr.f32.gmra.mxu0 %v477
    %v597 = vpop.f32.mrf.mxu0
    %v598 = vadd.f32 %v518, %v597
    %v599 = vpop.f32.mrf.mxu0
    %v600 = vadd.f32 %v522, %v599
    %601 = vmatprep.mubr.f32.mxu0 0.0
    %602 = vmatmul.mubr.f32.gmra.mxu0 %v478
    %v603 = vpop.f32.mrf.mxu0
    %v604 = vadd.f32 %v518, %v603
    %v605 = vpop.f32.mrf.mxu0
    %v606 = vadd.f32 %v522, %v605
    %607 = vmatprep.mubr.f32.mxu0 0.0
    %608 = vmatmul.mubr.f32.gmra.mxu0 %v479
    %v609 = vpop.f32.mrf.mxu0
    %v610 = vadd.f32 %v518, %v609
    %v611 = vpop.f32.mrf.mxu0
    %v612 = vadd.f32 %v522, %v611
    %613 = vmatprep.mubr.f32.mxu0 0.0
    %614 = vmatmul.mubr.f32.gmra.mxu0 %v480
    %v615 = vpop.f32.mrf.mxu0
    %v616 = vadd.f32 %v518, %v615
    %v617 = vpop.f32.mrf.mxu0
    %v618 = vadd.f32 %v522, %v617
    %619 = vdwg.mxu0
    %620 = vst [vmem:[#allocation11] sm:$0xff] %v592
    %621 = vst [vmem:[#allocation11 + $0x8] sm:$0xff] %v594
    %622 = vst [vmem:[#allocation11 + $0x10] sm:$0xff] %v598
    %623 = vst [vmem:[#allocation11 + $0x18] sm:$0xff] %v600
    %624 = vst [vmem:[#allocation11 + $0x20] sm:$0xff] %v604
    %625 = vst [vmem:[#allocation11 + $0x28] sm:$0xff] %v606
    %626 = vst [vmem:[#allocation11 + $0x30] sm:$0xff] %v610
    %627 = vst [vmem:[#allocation11 + $0x38] sm:$0xff] %v612
    %628 = vst [vmem:[#allocation11 + $0x40] sm:$0xff] %v616
    %629 = vst [vmem:[#allocation11 + $0x48] sm:$0xff] %v618
    // Predicated region
    $region58: #{tpu_custom_call.1} parent=1 // pred_check
      _
    $region59: #{tpu_custom_call.1} parent=1 // pred_check_branch
      %631 = sbr.rel (0) target = $region61
    $region60: #{tpu_custom_call.1} parent=1 // pred_region
      %s633 = ssub.s32 1280, 1280
      %634 = vsyncadd [#allocation4], %s633
      %s635 = sshll.u32 [#allocation11], 4
      %s636 = int_to_ptr.vmem [resolvable:$true] %s635
      %641 = dma.vmem_to_hbm [thread:$0]  %s636, 1280, %s9, [#allocation4], 256, 256, 16
    $region61: #{tpu_custom_call.1} parent=1 // pred_fallthru
      _
    // Predicated region
    $region62: #{tpu_custom_call.1} parent=1 // pred_check
      _
    $region63: #{tpu_custom_call.1} parent=1 // pred_check_branch
      %643 = sbr.rel (0) target = $region65
    $region64: #{tpu_custom_call.1} parent=1 // pred_region
      %644 = dma.done [#allocation4], 1280
    $region65: #{tpu_custom_call.1} parent=1 // pred_fallthru
      _
    %645 = vsyncpa [#allocation3], 1
    %646 = vsyncpa [#allocation6], 1
    %647 = vsyncpa [#allocation9], 1
    %648 = vsyncpa [#allocation4], 1

// kernel: tpu_custom_call.1
$region0: #{tpu_custom_call.1}
  #allocation0 [shape = 'u32[]', space=smem, size = 0x4, offset = 0x4, fixed_abs, tag = 'smem constant byte address 0x4 - core index']
  #allocation1 [shape = 'u32[144,128]{1,0:T(1,128)}', space=vmem, size = 0x12000, scoped, tag = 'internal scratch']
  %s0 = inlined_call_operand.hbm [shape: f32[40,256], index: 0, kind: input, shape index: {}]
  %s1 = inlined_call_operand.hbm [shape: f32[256,128], index: 1, kind: input, shape index: {}]
  %s2 = inlined_call_operand.vmem [shape: f32[1,128], index: 2, kind: input, shape index: {}]
  %s3 = inlined_call_operand.hbm [shape: f32[128,128], index: 3, kind: input, shape index: {}]
  %s4 = inlined_call_operand.vmem [shape: f32[1,128], index: 4, kind: input, shape index: {}]
  %s5 = inlined_call_operand.hbm [shape: f32[128,128], index: 5, kind: input, shape index: {}]
  %s6 = inlined_call_operand.vmem [shape: f32[1,128], index: 6, kind: input, shape index: {}]
  %s7 = inlined_call_operand.hbm [shape: f32[128,256], index: 7, kind: input, shape index: {}]
  %s8 = inlined_call_operand.vmem [shape: f32[1,256], index: 8, kind: input, shape index: {}]
  %s9 = inlined_call_operand.hbm [shape: f32[40,256], index: 9, kind: output, shape index: {}]
  %s10 = sld [smem:[#allocation0]]
  $region66: #{tpu_custom_call.1} parent=0
    _
  %s12 = ssub.s32 1, %s10
  %s13 = scalar_select 0, %s12, %s10
  $region1: #{tpu_custom_call.1} parent=0
    #allocation2 [shape = 'u8[40960]{0}', space=vmem, size = 0xa000, scoped, tag = 'input window, operand 0, single buffered']
    #allocation3 [shape = 's32[1]{0}', space=sflag, size = 0x4, scoped, tag = 'scoped memory for tpu_custom_call.1']
    #allocation4 [shape = 's32[1]{0}', space=sflag, size = 0x4, scoped, tag = 'scoped memory for tpu_custom_call.1']
    #allocation5 [shape = 'u8[131072]{0}', space=vmem, size = 0x20000, scoped, tag = 'input window, operand 1, single buffered']
    #allocation6 [shape = 's32[1]{0}', space=sflag, size = 0x4, scoped, tag = 'scoped memory for tpu_custom_call.1']
    #allocation7 [shape = 'u8[65536]{0}', space=vmem, size = 0x10000, scoped, tag = 'input window, operand 3, single buffered']
    #allocation8 [shape = 'u8[65536]{0}', space=vmem, size = 0x10000, scoped, tag = 'input window, operand 5, single buffered']
    #allocation9 [shape = 's32[1]{0}', space=sflag, size = 0x4, scoped, tag = 'scoped memory for tpu_custom_call.1']
    #allocation10 [shape = 'u8[131072]{0}', space=vmem, size = 0x20000, scoped, tag = 'input window, operand 7, single buffered']
    #allocation11 [shape = 'u8[40960]{0}', space=vmem, size = 0xa000, scoped, tag = 'output window, operand 0, single buffered']
    %14 = vsyncpa [#allocation3], 0
    %15 = vsyncpa [#allocation6], 0
    %16 = vsyncpa [#allocation9], 0
    %17 = vsyncpa [#allocation4], 0
    // Predicated region
    $region2: #{tpu_custom_call.1} parent=1 // pred_check
      _
    $region3: #{tpu_custom_call.1} parent=1 // pred_check_branch
      %19 = sbr.rel (0) target = $region5
    $region4: #{tpu_custom_call.1} parent=1 // pred_region
      %s21 = ssub.s32 1280, 1280
      %22 = vsyncadd [#allocation3], %s21
      %s23 = sshll.u32 [#allocation2], 4
      %s24 = int_to_ptr.vmem [resolvable:$true] %s23
      %29 = dma.hbm_to_vmem [thread:$0]  %s0, 1280, %s24, [#allocation3], 256, 256, 16
    $region5: #{tpu_custom_call.1} parent=1 // pred_fallthru
      _
    // Predicated region
    $region6: #{tpu_custom_call.1} parent=1 // pred_check
      _
    $region7: #{tpu_custom_call.1} parent=1 // pred_check_branch
      %31 = sbr.rel (0) target = $region9
    $region8: #{tpu_custom_call.1} parent=1 // pred_region
      %s33 = ssub.s32 4096, 4096
      %34 = vsyncadd [#allocation6], %s33
      %s35 = sshll.u32 [#allocation5], 4
      %s36 = int_to_ptr.vmem [resolvable:$true] %s35
      %41 = dma.hbm_to_vmem [thread:$0]  %s1, 4096, %s36, [#allocation6], 128, 128, 8
    $region9: #{tpu_custom_call.1} parent=1 // pred_fallthru
      _
    // Predicated region
    $region10: #{tpu_custom_call.1} parent=1 // pred_check
      _
    $region11: #{tpu_custom_call.1} parent=1 // pred_check_branch
      %43 = sbr.rel (0) target = $region13
    $region12: #{tpu_custom_call.1} parent=1 // pred_region
      _
    $region13: #{tpu_custom_call.1} parent=1 // pred_fallthru
      _
    // Predicated region
    $region14: #{tpu_custom_call.1} parent=1 // pred_check
      _
    $region15: #{tpu_custom_call.1} parent=1 // pred_check_branch
      %45 = sbr.rel (0) target = $region17
    $region16: #{tpu_custom_call.1} parent=1 // pred_region
      %s47 = ssub.s32 2048, 2048
      %48 = vsyncadd [#allocation6], %s47
      %s49 = sshll.u32 [#allocation7], 4
      %s50 = int_to_ptr.vmem [resolvable:$true] %s49
      %55 = dma.hbm_to_vmem [thread:$0]  %s3, 2048, %s50, [#allocation6], 128, 128, 8
    $region17: #{tpu_custom_call.1} parent=1 // pred_fallthru
      _
    // Predicated region
    $region18: #{tpu_custom_call.1} parent=1 // pred_check
      _
    $region19: #{tpu_custom_call.1} parent=1 // pred_check_branch
      %57 = sbr.rel (0) target = $region21
    $region20: #{tpu_custom_call.1} parent=1 // pred_region
      _
    $region21: #{tpu_custom_call.1} parent=1 // pred_fallthru
      _
    // Predicated region
    $region22: #{tpu_custom_call.1} parent=1 // pred_check
      _
    $region23: #{tpu_custom_call.1} parent=1 // pred_check_branch
      %59 = sbr.rel (0) target = $region25
    $region24: #{tpu_custom_call.1} parent=1 // pred_region
      %s61 = ssub.s32 2048, 2048
      %62 = vsyncadd [#allocation9], %s61
      %s63 = sshll.u32 [#allocation8], 4
      %s64 = int_to_ptr.vmem [resolvable:$true] %s63
      %69 = dma.hbm_to_vmem [thread:$0]  %s5, 2048, %s64, [#allocation9], 128, 128, 8
    $region25: #{tpu_custom_call.1} parent=1 // pred_fallthru
      _
    // Predicated region
    $region26: #{tpu_custom_call.1} parent=1 // pred_check
      _
    $region27: #{tpu_custom_call.1} parent=1 // pred_check_branch
      %71 = sbr.rel (0) target = $region29
    $region28: #{tpu_custom_call.1} parent=1 // pred_region
      _
    $region29: #{tpu_custom_call.1} parent=1 // pred_fallthru
      _
    // Predicated region
    $region30: #{tpu_custom_call.1} parent=1 // pred_check
      _
    $region31: #{tpu_custom_call.1} parent=1 // pred_check_branch
      %73 = sbr.rel (0) target = $region33
    $region32: #{tpu_custom_call.1} parent=1 // pred_region
      %s75 = ssub.s32 4096, 4096
      %76 = vsyncadd [#allocation9], %s75
      %s77 = sshll.u32 [#allocation10], 4
      %s78 = int_to_ptr.vmem [resolvable:$true] %s77
      %83 = dma.hbm_to_vmem [thread:$0]  %s7, 4096, %s78, [#allocation9], 256, 256, 16
    $region33: #{tpu_custom_call.1} parent=1 // pred_fallthru
      _
    // Predicated region
    $region34: #{tpu_custom_call.1} parent=1 // pred_check
      _
    $region35: #{tpu_custom_call.1} parent=1 // pred_check_branch
      %85 = sbr.rel (0) target = $region37
    $region36: #{tpu_custom_call.1} parent=1 // pred_region
      _
    $region37: #{tpu_custom_call.1} parent=1 // pred_fallthru
      _
    // Predicated region
    $region38: #{tpu_custom_call.1} parent=1 // pred_check
      _
    $region39: #{tpu_custom_call.1} parent=1 // pred_check_branch
      %87 = sbr.rel (0) target = $region41
    $region40: #{tpu_custom_call.1} parent=1 // pred_region
      %88 = dma.done [#allocation3], 1280
    $region41: #{tpu_custom_call.1} parent=1 // pred_fallthru
      _
    // Predicated region
    $region42: #{tpu_custom_call.1} parent=1 // pred_check
      _
    $region43: #{tpu_custom_call.1} parent=1 // pred_check_branch
      %90 = sbr.rel (0) target = $region45
    $region44: #{tpu_custom_call.1} parent=1 // pred_region
      %91 = dma.done [#allocation6], 4096
    $region45: #{tpu_custom_call.1} parent=1 // pred_fallthru
      _
    // Predicated region
    $region46: #{tpu_custom_call.1} parent=1 // pred_check
      _
    $region47: #{tpu_custom_call.1} parent=1 // pred_check_branch
      %93 = sbr.rel (0) target = $region49
    $region48: #{tpu_custom_call.1} parent=1 // pred_region
      %94 = dma.done [#allocation6], 2048
    $region49: #{tpu_custom_call.1} parent=1 // pred_fallthru
      _
    // Predicated region
    $region50: #{tpu_custom_call.1} parent=1 // pred_check
      _
    $region51: #{tpu_custom_call.1} parent=1 // pred_check_branch
      %96 = sbr.rel (0) target = $region53
    $region52: #{tpu_custom_call.1} parent=1 // pred_region
      %97 = dma.done [#allocation9], 2048
    $region53: #{tpu_custom_call.1} parent=1 // pred_fallthru
      _
    // Predicated region
    $region54: #{tpu_custom_call.1} parent=1 // pred_check
      _
    $region55: #{tpu_custom_call.1} parent=1 // pred_check_branch
      %99 = sbr.rel (0) target = $region57
    $region56: #{tpu_custom_call.1} parent=1 // pred_region
      %100 = dma.done [#allocation9], 4096
    $region57: #{tpu_custom_call.1} parent=1 // pred_fallthru
      _
    %v101 = vld [vmem:[#allocation2] sm:$0xff]
    %v102 = vld [vmem:[#allocation2 + $0x8] sm:$0xff]
    %v103 = vld [vmem:[#allocation2 + $0x10] sm:$0xff]
    %v104 = vld [vmem:[#allocation2 + $0x18] sm:$0xff]
    %v105 = vld [vmem:[#allocation2 + $0x20] sm:$0xff]
    %v106 = vld [vmem:[#allocation2 + $0x28] sm:$0xff]
    %v107 = vld [vmem:[#allocation2 + $0x30] sm:$0xff]
    %v108 = vld [vmem:[#allocation2 + $0x38] sm:$0xff]
    %v109 = vld [vmem:[#allocation2 + $0x40] sm:$0xff]
    %v110 = vld [vmem:[#allocation2 + $0x48] sm:$0xff]
    %v111 = vld [vmem:[#allocation5] sm:$0xff]
    %v112 = vld [vmem:[#allocation5 + $0x8] sm:$0xff]
    %v113 = vld [vmem:[#allocation5 + $0x10] sm:$0xff]
    %v114 = vld [vmem:[#allocation5 + $0x18] sm:$0xff]
    %v115 = vld [vmem:[#allocation5 + $0x20] sm:$0xff]
    %v116 = vld [vmem:[#allocation5 + $0x28] sm:$0xff]
    %v117 = vld [vmem:[#allocation5 + $0x30] sm:$0xff]
    %v118 = vld [vmem:[#allocation5 + $0x38] sm:$0xff]
    %v119 = vld [vmem:[#allocation5 + $0x40] sm:$0xff]
    %v120 = vld [vmem:[#allocation5 + $0x48] sm:$0xff]
    %v121 = vld [vmem:[#allocation5 + $0x50] sm:$0xff]
    %v122 = vld [vmem:[#allocation5 + $0x58] sm:$0xff]
    %v123 = vld [vmem:[#allocation5 + $0x60] sm:$0xff]
    %v124 = vld [vmem:[#allocation5 + $0x68] sm:$0xff]
    %v125 = vld [vmem:[#allocation5 + $0x70] sm:$0xff]
    %v126 = vld [vmem:[#allocation5 + $0x78] sm:$0xff]
    %v127 = vld [vmem:[#allocation5 + $0x80] sm:$0xff]
    %v128 = vld [vmem:[#allocation5 + $0x88] sm:$0xff]
    %v129 = vld [vmem:[#allocation5 + $0x90] sm:$0xff]
    %v130 = vld [vmem:[#allocation5 + $0x98] sm:$0xff]
    %v131 = vld [vmem:[#allocation5 + $0xa0] sm:$0xff]
    %v132 = vld [vmem:[#allocation5 + $0xa8] sm:$0xff]
    %v133 = vld [vmem:[#allocation5 + $0xb0] sm:$0xff]
    %v134 = vld [vmem:[#allocation5 + $0xb8] sm:$0xff]
    %v135 = vld [vmem:[#allocation5 + $0xc0] sm:$0xff]
    %v136 = vld [vmem:[#allocation5 + $0xc8] sm:$0xff]
    %v137 = vld [vmem:[#allocation5 + $0xd0] sm:$0xff]
    %v138 = vld [vmem:[#allocation5 + $0xd8] sm:$0xff]
    %v139 = vld [vmem:[#allocation5 + $0xe0] sm:$0xff]
    %v140 = vld [vmem:[#allocation5 + $0xe8] sm:$0xff]
    %v141 = vld [vmem:[#allocation5 + $0xf0] sm:$0xff]
    %v142 = vld [vmem:[#allocation5 + $0xf8] sm:$0xff]
    %v143 = vld [vmem:[%s2] sm:$0x1]
    %v145 = vlaneseq
    %v146 = vshrl.u32 %v145, 7
    %v147 = vsub.s32 0, %v146
    %v148 = vrot.slane %v143, %v147
    %150 = vmatprep.subr.mxu0 0.0
    %151 = vmatpush1.msra.mxu0 %v126
    %152 = vmatprep.subr.mxu0 0.0
    %153 = vmatpush1.msra.mxu0 %v125
    %154 = vmatprep.subr.mxu0 0.0
    %155 = vmatpush1.msra.mxu0 %v124
    %156 = vmatprep.subr.mxu0 0.0
    %157 = vmatpush1.msra.mxu0 %v123
    %158 = vmatprep.subr.mxu0 0.0
    %159 = vmatpush1.msra.mxu0 %v122
    %160 = vmatprep.subr.mxu0 0.0
    %161 = vmatpush1.msra.mxu0 %v121
    %162 = vmatprep.subr.mxu0 0.0
    %163 = vmatpush1.msra.mxu0 %v120
    %164 = vmatprep.subr.mxu0 0.0
    %165 = vmatpush1.msra.mxu0 %v119
    %166 = vmatprep.subr.mxu0 0.0
    %167 = vmatpush1.msra.mxu0 %v118
    %168 = vmatprep.subr.mxu0 0.0
    %169 = vmatpush1.msra.mxu0 %v117
    %170 = vmatprep.subr.mxu0 0.0
    %171 = vmatpush1.msra.mxu0 %v116
    %172 = vmatprep.subr.mxu0 0.0
    %173 = vmatpush1.msra.mxu0 %v115
    %174 = vmatprep.subr.mxu0 0.0
    %175 = vmatpush1.msra.mxu0 %v114
    %176 = vmatprep.subr.mxu0 0.0
    %177 = vmatpush1.msra.mxu0 %v113
    %178 = vmatprep.subr.mxu0 0.0
    %179 = vmatpush1.msra.mxu0 %v112
    %180 = vmatprep.subr.mxu0 0.0
    %181 = vmatpush1.msra.mxu0 %v111
    %182 = vmatprep.subr.mxu0 0.0
    %183 = vmatpush2.msra.mxu0 %v142
    %184 = vmatprep.subr.mxu0 0.0
    %185 = vmatpush2.msra.mxu0 %v141
    %186 = vmatprep.subr.mxu0 0.0
    %187 = vmatpush2.msra.mxu0 %v140
    %188 = vmatprep.subr.mxu0 0.0
    %189 = vmatpush2.msra.mxu0 %v139
    %190 = vmatprep.subr.mxu0 0.0
    %191 = vmatpush2.msra.mxu0 %v138
    %192 = vmatprep.subr.mxu0 0.0
    %193 = vmatpush2.msra.mxu0 %v137
    %194 = vmatprep.subr.mxu0 0.0
    %195 = vmatpush2.msra.mxu0 %v136
    %196 = vmatprep.subr.mxu0 0.0
    %197 = vmatpush2.msra.mxu0 %v135
    %198 = vmatprep.subr.mxu0 0.0
    %199 = vmatpush2.msra.mxu0 %v134
    %200 = vmatprep.subr.mxu0 0.0
    %201 = vmatpush2.msra.mxu0 %v133
    %202 = vmatprep.subr.mxu0 0.0
    %203 = vmatpush2.msra.mxu0 %v132
    %204 = vmatprep.subr.mxu0 0.0
    %205 = vmatpush2.msra.mxu0 %v131
    %206 = vmatprep.subr.mxu0 0.0
    %207 = vmatpush2.msra.mxu0 %v130
    %208 = vmatprep.subr.mxu0 0.0
    %209 = vmatpush2.msra.mxu0 %v129
    %210 = vmatprep.subr.mxu0 0.0
    %211 = vmatpush2.msra.mxu0 %v128
    %212 = vmatprep.subr.mxu0 0.0
    %213 = vmatpush2.msra.mxu0 %v127
    %214 = vmatprep.mubr.f32.mxu0 %v102
    %215 = vmatmul.mubr.f32.gmra.mxu0 %v101
    %v216 = vpop.f32.mrf.mxu0
    %v217 = vadd.f32 %v148, %v216
    %v218 = vpop.f32.mrf.mxu0
    %219 = vmatprep.mubr.f32.mxu0 %v104
    %220 = vmatmul.mubr.f32.gmra.mxu0 %v103
    %v221 = vpop.f32.mrf.mxu0
    %v222 = vadd.f32 %v148, %v221
    %v223 = vpop.f32.mrf.mxu0
    %224 = vmatprep.mubr.f32.mxu0 %v106
    %225 = vmatmul.mubr.f32.gmra.mxu0 %v105
    %v226 = vpop.f32.mrf.mxu0
    %v227 = vadd.f32 %v148, %v226
    %v228 = vpop.f32.mrf.mxu0
    %229 = vmatprep.mubr.f32.mxu0 %v108
    %230 = vmatmul.mubr.f32.gmra.mxu0 %v107
    %v231 = vpop.f32.mrf.mxu0
    %v232 = vadd.f32 %v148, %v231
    %v233 = vpop.f32.mrf.mxu0
    %234 = vmatprep.mubr.f32.mxu0 %v110
    %235 = vmatmul.mubr.f32.gmra.mxu0 %v109
    %v236 = vpop.f32.mrf.mxu0
    %v237 = vadd.f32 %v148, %v236
    %v238 = vpop.f32.mrf.mxu0
    %239 = vdwg.mxu0
    %v240 = vmax.f32 %v217, 0.0
    %v241 = vmax.f32 %v222, 0.0
    %v242 = vmax.f32 %v227, 0.0
    %v243 = vmax.f32 %v232, 0.0
    %v244 = vmax.f32 %v237, 0.0
    %v245 = vld [vmem:[#allocation7] sm:$0xff]
    %v246 = vld [vmem:[#allocation7 + $0x8] sm:$0xff]
    %v247 = vld [vmem:[#allocation7 + $0x10] sm:$0xff]
    %v248 = vld [vmem:[#allocation7 + $0x18] sm:$0xff]
    %v249 = vld [vmem:[#allocation7 + $0x20] sm:$0xff]
    %v250 = vld [vmem:[#allocation7 + $0x28] sm:$0xff]
    %v251 = vld [vmem:[#allocation7 + $0x30] sm:$0xff]
    %v252 = vld [vmem:[#allocation7 + $0x38] sm:$0xff]
    %v253 = vld [vmem:[#allocation7 + $0x40] sm:$0xff]
    %v254 = vld [vmem:[#allocation7 + $0x48] sm:$0xff]
    %v255 = vld [vmem:[#allocation7 + $0x50] sm:$0xff]
    %v256 = vld [vmem:[#allocation7 + $0x58] sm:$0xff]
    %v257 = vld [vmem:[#allocation7 + $0x60] sm:$0xff]
    %v258 = vld [vmem:[#allocation7 + $0x68] sm:$0xff]
    %v259 = vld [vmem:[#allocation7 + $0x70] sm:$0xff]
    %v260 = vld [vmem:[#allocation7 + $0x78] sm:$0xff]
    %v261 = vld [vmem:[%s4] sm:$0x1]
    %v263 = vlaneseq
    %v264 = vshrl.u32 %v263, 7
    %v265 = vsub.s32 0, %v264
    %v266 = vrot.slane %v261, %v265
    %268 = vmatprep.subr.mxu0 0.0
    %269 = vmatpush1.msra.mxu0 %v260
    %270 = vmatprep.subr.mxu0 0.0
    %271 = vmatpush1.msra.mxu0 %v259
    %272 = vmatprep.subr.mxu0 0.0
    %273 = vmatpush1.msra.mxu0 %v258
    %274 = vmatprep.subr.mxu0 0.0
    %275 = vmatpush1.msra.mxu0 %v257
    %276 = vmatprep.subr.mxu0 0.0
    %277 = vmatpush1.msra.mxu0 %v256
    %278 = vmatprep.subr.mxu0 0.0
    %279 = vmatpush1.msra.mxu0 %v255
    %280 = vmatprep.subr.mxu0 0.0
    %281 = vmatpush1.msra.mxu0 %v254
    %282 = vmatprep.subr.mxu0 0.0
    %283 = vmatpush1.msra.mxu0 %v253
    %284 = vmatprep.subr.mxu0 0.0
    %285 = vmatpush1.msra.mxu0 %v252
    %286 = vmatprep.subr.mxu0 0.0
    %287 = vmatpush1.msra.mxu0 %v251
    %288 = vmatprep.subr.mxu0 0.0
    %289 = vmatpush1.msra.mxu0 %v250
    %290 = vmatprep.subr.mxu0 0.0
    %291 = vmatpush1.msra.mxu0 %v249
    %292 = vmatprep.subr.mxu0 0.0
    %293 = vmatpush1.msra.mxu0 %v248
    %294 = vmatprep.subr.mxu0 0.0
    %295 = vmatpush1.msra.mxu0 %v247
    %296 = vmatprep.subr.mxu0 0.0
    %297 = vmatpush1.msra.mxu0 %v246
    %298 = vmatprep.subr.mxu0 0.0
    %299 = vmatpush1.msra.mxu0 %v245
    %300 = vmatprep.subr.mxu0 0.0
    %301 = vmatpush2.msra.mxu0 0.0
    %302 = vmatprep.subr.mxu0 0.0
    %303 = vmatpush2.msra.mxu0 0.0
    %304 = vmatprep.subr.mxu0 0.0
    %305 = vmatpush2.msra.mxu0 0.0
    %306 = vmatprep.subr.mxu0 0.0
    %307 = vmatpush2.msra.mxu0 0.0
    %308 = vmatprep.subr.mxu0 0.0
    %309 = vmatpush2.msra.mxu0 0.0
    %310 = vmatprep.subr.mxu0 0.0
    %311 = vmatpush2.msra.mxu0 0.0
    %312 = vmatprep.subr.mxu0 0.0
    %313 = vmatpush2.msra.mxu0 0.0
    %314 = vmatprep.subr.mxu0 0.0
    %315 = vmatpush2.msra.mxu0 0.0
    %316 = vmatprep.subr.mxu0 0.0
    %317 = vmatpush2.msra.mxu0 0.0
    %318 = vmatprep.subr.mxu0 0.0
    %319 = vmatpush2.msra.mxu0 0.0
    %320 = vmatprep.subr.mxu0 0.0
    %321 = vmatpush2.msra.mxu0 0.0
    %322 = vmatprep.subr.mxu0 0.0
    %323 = vmatpush2.msra.mxu0 0.0
    %324 = vmatprep.subr.mxu0 0.0
    %325 = vmatpush2.msra.mxu0 0.0
    %326 = vmatprep.subr.mxu0 0.0
    %327 = vmatpush2.msra.mxu0 0.0
    %328 = vmatprep.subr.mxu0 0.0
    %329 = vmatpush2.msra.mxu0 0.0
    %330 = vmatprep.subr.mxu0 0.0
    %331 = vmatpush2.msra.mxu0 0.0
    %332 = vmatprep.mubr.f32.mxu0 0.0
    %333 = vmatmul.mubr.f32.gmra.mxu0 %v240
    %v334 = vpop.f32.mrf.mxu0
    %v335 = vadd.f32 %v266, %v334
    %v336 = vpop.f32.mrf.mxu0
    %337 = vmatprep.mubr.f32.mxu0 0.0
    %338 = vmatmul.mubr.f32.gmra.mxu0 %v241
    %v339 = vpop.f32.mrf.mxu0
    %v340 = vadd.f32 %v266, %v339
    %v341 = vpop.f32.mrf.mxu0
    %342 = vmatprep.mubr.f32.mxu0 0.0
    %343 = vmatmul.mubr.f32.gmra.mxu0 %v242
    %v344 = vpop.f32.mrf.mxu0
    %v345 = vadd.f32 %v266, %v344
    %v346 = vpop.f32.mrf.mxu0
    %347 = vmatprep.mubr.f32.mxu0 0.0
    %348 = vmatmul.mubr.f32.gmra.mxu0 %v243
    %v349 = vpop.f32.mrf.mxu0
    %v350 = vadd.f32 %v266, %v349
    %v351 = vpop.f32.mrf.mxu0
    %352 = vmatprep.mubr.f32.mxu0 0.0
    %353 = vmatmul.mubr.f32.gmra.mxu0 %v244
    %v354 = vpop.f32.mrf.mxu0
    %v355 = vadd.f32 %v266, %v354
    %v356 = vpop.f32.mrf.mxu0
    %357 = vdwg.mxu0
    %v358 = vmax.f32 %v335, 0.0
    %v359 = vmax.f32 %v340, 0.0
    %v360 = vmax.f32 %v345, 0.0
    %v361 = vmax.f32 %v350, 0.0
    %v362 = vmax.f32 %v355, 0.0
    %v363 = vld [vmem:[#allocation8] sm:$0xff]
    %v364 = vld [vmem:[#allocation8 + $0x8] sm:$0xff]
    %v365 = vld [vmem:[#allocation8 + $0x10] sm:$0xff]
    %v366 = vld [vmem:[#allocation8 + $0x18] sm:$0xff]
    %v367 = vld [vmem:[#allocation8 + $0x20] sm:$0xff]
    %v368 = vld [vmem:[#allocation8 + $0x28] sm:$0xff]
    %v369 = vld [vmem:[#allocation8 + $0x30] sm:$0xff]
    %v370 = vld [vmem:[#allocation8 + $0x38] sm:$0xff]
    %v371 = vld [vmem:[#allocation8 + $0x40] sm:$0xff]
    %v372 = vld [vmem:[#allocation8 + $0x48] sm:$0xff]
    %v373 = vld [vmem:[#allocation8 + $0x50] sm:$0xff]
    %v374 = vld [vmem:[#allocation8 + $0x58] sm:$0xff]
    %v375 = vld [vmem:[#allocation8 + $0x60] sm:$0xff]
    %v376 = vld [vmem:[#allocation8 + $0x68] sm:$0xff]
    %v377 = vld [vmem:[#allocation8 + $0x70] sm:$0xff]
    %v378 = vld [vmem:[#allocation8 + $0x78] sm:$0xff]
    %v379 = vld [vmem:[%s6] sm:$0x1]
    %v381 = vlaneseq
    %v382 = vshrl.u32 %v381, 7
    %v383 = vsub.s32 0, %v382
    %v384 = vrot.slane %v379, %v383
    %386 = vmatprep.subr.mxu0 0.0
    %387 = vmatpush1.msra.mxu0 %v378
    %388 = vmatprep.subr.mxu0 0.0
    %389 = vmatpush1.msra.mxu0 %v377
    %390 = vmatprep.subr.mxu0 0.0
    %391 = vmatpush1.msra.mxu0 %v376
    %392 = vmatprep.subr.mxu0 0.0
    %393 = vmatpush1.msra.mxu0 %v375
    %394 = vmatprep.subr.mxu0 0.0
    %395 = vmatpush1.msra.mxu0 %v374
    %396 = vmatprep.subr.mxu0 0.0
    %397 = vmatpush1.msra.mxu0 %v373
    %398 = vmatprep.subr.mxu0 0.0
    %399 = vmatpush1.msra.mxu0 %v372
    %400 = vmatprep.subr.mxu0 0.0
    %401 = vmatpush1.msra.mxu0 %v371
    %402 = vmatprep.subr.mxu0 0.0
    %403 = vmatpush1.msra.mxu0 %v370
    %404 = vmatprep.subr.mxu0 0.0
    %405 = vmatpush1.msra.mxu0 %v369
    %406 = vmatprep.subr.mxu0 0.0
    %407 = vmatpush1.msra.mxu0 %v368
    %408 = vmatprep.subr.mxu0 0.0
    %409 = vmatpush1.msra.mxu0 %v367
    %410 = vmatprep.subr.mxu0 0.0
    %411 = vmatpush1.msra.mxu0 %v366
    %412 = vmatprep.subr.mxu0 0.0
    %413 = vmatpush1.msra.mxu0 %v365
    %414 = vmatprep.subr.mxu0 0.0
    %415 = vmatpush1.msra.mxu0 %v364
    %416 = vmatprep.subr.mxu0 0.0
    %417 = vmatpush1.msra.mxu0 %v363
    %418 = vmatprep.subr.mxu0 0.0
    %419 = vmatpush2.msra.mxu0 0.0
    %420 = vmatprep.subr.mxu0 0.0
    %421 = vmatpush2.msra.mxu0 0.0
    %422 = vmatprep.subr.mxu0 0.0
    %423 = vmatpush2.msra.mxu0 0.0
    %424 = vmatprep.subr.mxu0 0.0
    %425 = vmatpush2.msra.mxu0 0.0
    %426 = vmatprep.subr.mxu0 0.0
    %427 = vmatpush2.msra.mxu0 0.0
    %428 = vmatprep.subr.mxu0 0.0
    %429 = vmatpush2.msra.mxu0 0.0
    %430 = vmatprep.subr.mxu0 0.0
    %431 = vmatpush2.msra.mxu0 0.0
    %432 = vmatprep.subr.mxu0 0.0
    %433 = vmatpush2.msra.mxu0 0.0
    %434 = vmatprep.subr.mxu0 0.0
    %435 = vmatpush2.msra.mxu0 0.0
    %436 = vmatprep.subr.mxu0 0.0
    %437 = vmatpush2.msra.mxu0 0.0
    %438 = vmatprep.subr.mxu0 0.0
    %439 = vmatpush2.msra.mxu0 0.0
    %440 = vmatprep.subr.mxu0 0.0
    %441 = vmatpush2.msra.mxu0 0.0
    %442 = vmatprep.subr.mxu0 0.0
    %443 = vmatpush2.msra.mxu0 0.0
    %444 = vmatprep.subr.mxu0 0.0
    %445 = vmatpush2.msra.mxu0 0.0
    %446 = vmatprep.subr.mxu0 0.0
    %447 = vmatpush2.msra.mxu0 0.0
    %448 = vmatprep.subr.mxu0 0.0
    %449 = vmatpush2.msra.mxu0 0.0
    %450 = vmatprep.mubr.f32.mxu0 0.0
    %451 = vmatmul.mubr.f32.gmra.mxu0 %v358
    %v452 = vpop.f32.mrf.mxu0
    %v453 = vadd.f32 %v384, %v452
    %v454 = vpop.f32.mrf.mxu0
    %455 = vmatprep.mubr.f32.mxu0 0.0
    %456 = vmatmul.mubr.f32.gmra.mxu0 %v359
    %v457 = vpop.f32.mrf.mxu0
    %v458 = vadd.f32 %v384, %v457
    %v459 = vpop.f32.mrf.mxu0
    %460 = vmatprep.mubr.f32.mxu0 0.0
    %461 = vmatmul.mubr.f32.gmra.mxu0 %v360
    %v462 = vpop.f32.mrf.mxu0
    %v463 = vadd.f32 %v384, %v462
    %v464 = vpop.f32.mrf.mxu0
    %465 = vmatprep.mubr.f32.mxu0 0.0
    %466 = vmatmul.mubr.f32.gmra.mxu0 %v361
    %v467 = vpop.f32.mrf.mxu0
    %v468 = vadd.f32 %v384, %v467
    %v469 = vpop.f32.mrf.mxu0
    %470 = vmatprep.mubr.f32.mxu0 0.0
    %471 = vmatmul.mubr.f32.gmra.mxu0 %v362
    %v472 = vpop.f32.mrf.mxu0
    %v473 = vadd.f32 %v384, %v472
    %v474 = vpop.f32.mrf.mxu0
    %475 = vdwg.mxu0
    %v476 = vmax.f32 %v453, 0.0
    %v477 = vmax.f32 %v458, 0.0
    %v478 = vmax.f32 %v463, 0.0
    %v479 = vmax.f32 %v468, 0.0
    %v480 = vmax.f32 %v473, 0.0
    %v481 = vld [vmem:[#allocation10] sm:$0xff]
    %v482 = vld [vmem:[#allocation10 + $0x8] sm:$0xff]
    %v483 = vld [vmem:[#allocation10 + $0x10] sm:$0xff]
    %v484 = vld [vmem:[#allocation10 + $0x18] sm:$0xff]
    %v485 = vld [vmem:[#allocation10 + $0x20] sm:$0xff]
    %v486 = vld [vmem:[#allocation10 + $0x28] sm:$0xff]
    %v487 = vld [vmem:[#allocation10 + $0x30] sm:$0xff]
    %v488 = vld [vmem:[#allocation10 + $0x38] sm:$0xff]
    %v489 = vld [vmem:[#allocation10 + $0x40] sm:$0xff]
    %v490 = vld [vmem:[#allocation10 + $0x48] sm:$0xff]
    %v491 = vld [vmem:[#allocation10 + $0x50] sm:$0xff]
    %v492 = vld [vmem:[#allocation10 + $0x58] sm:$0xff]
    %v493 = vld [vmem:[#allocation10 + $0x60] sm:$0xff]
    %v494 = vld [vmem:[#allocation10 + $0x68] sm:$0xff]
    %v495 = vld [vmem:[#allocation10 + $0x70] sm:$0xff]
    %v496 = vld [vmem:[#allocation10 + $0x78] sm:$0xff]
    %v497 = vld [vmem:[#allocation10 + $0x80] sm:$0xff]
    %v498 = vld [vmem:[#allocation10 + $0x88] sm:$0xff]
    %v499 = vld [vmem:[#allocation10 + $0x90] sm:$0xff]
    %v500 = vld [vmem:[#allocation10 + $0x98] sm:$0xff]
    %v501 = vld [vmem:[#allocation10 + $0xa0] sm:$0xff]
    %v502 = vld [vmem:[#allocation10 + $0xa8] sm:$0xff]
    %v503 = vld [vmem:[#allocation10 + $0xb0] sm:$0xff]
    %v504 = vld [vmem:[#allocation10 + $0xb8] sm:$0xff]
    %v505 = vld [vmem:[#allocation10 + $0xc0] sm:$0xff]
    %v506 = vld [vmem:[#allocation10 + $0xc8] sm:$0xff]
    %v507 = vld [vmem:[#allocation10 + $0xd0] sm:$0xff]
    %v508 = vld [vmem:[#allocation10 + $0xd8] sm:$0xff]
    %v509 = vld [vmem:[#allocation10 + $0xe0] sm:$0xff]
    %v510 = vld [vmem:[#allocation10 + $0xe8] sm:$0xff]
    %v511 = vld [vmem:[#allocation10 + $0xf0] sm:$0xff]
    %v512 = vld [vmem:[#allocation10 + $0xf8] sm:$0xff]
    %v513 = vld [vmem:[%s8] sm:$0x3]
    %v515 = vlaneseq
    %v516 = vshrl.u32 %v515, 7
    %v517 = vsub.s32 0, %v516
    %v518 = vrot.slane %v513, %v517
    %v519 = vlaneseq
    %v520 = vshrl.u32 %v519, 7
    %v521 = vsub.s32 1, %v520
    %v522 = vrot.slane %v513, %v521
    %525 = vmatprep.subr.mxu0 %v512
    %526 = vmatpush1.msra.mxu0 %v511
    %527 = vmatprep.subr.mxu0 %v510
    %528 = vmatpush1.msra.mxu0 %v509
    %529 = vmatprep.subr.mxu0 %v508
    %530 = vmatpush1.msra.mxu0 %v507
    %531 = vmatprep.subr.mxu0 %v506
    %532 = vmatpush1.msra.mxu0 %v505
    %533 = vmatprep.subr.mxu0 %v504
    %534 = vmatpush1.msra.mxu0 %v503
    %535 = vmatprep.subr.mxu0 %v502
    %536 = vmatpush1.msra.mxu0 %v501
    %537 = vmatprep.subr.mxu0 %v500
    %538 = vmatpush1.msra.mxu0 %v499
    %539 = vmatprep.subr.mxu0 %v498
    %540 = vmatpush1.msra.mxu0 %v497
    %541 = vmatprep.subr.mxu0 %v496
    %542 = vmatpush1.msra.mxu0 %v495
    %543 = vmatprep.subr.mxu0 %v494
    %544 = vmatpush1.msra.mxu0 %v493
    %545 = vmatprep.subr.mxu0 %v492
    %546 = vmatpush1.msra.mxu0 %v491
    %547 = vmatprep.subr.mxu0 %v490
    %548 = vmatpush1.msra.mxu0 %v489
    %549 = vmatprep.subr.mxu0 %v488
    %550 = vmatpush1.msra.mxu0 %v487
    %551 = vmatprep.subr.mxu0 %v486
    %552 = vmatpush1.msra.mxu0 %v485
    %553 = vmatprep.subr.mxu0 %v484
    %554 = vmatpush1.msra.mxu0 %v483
    %555 = vmatprep.subr.mxu0 %v482
    %556 = vmatpush1.msra.mxu0 %v481
    %557 = vmatprep.subr.mxu0 0.0
    %558 = vmatpush2.msra.mxu0 0.0
    %559 = vmatprep.subr.mxu0 0.0
    %560 = vmatpush2.msra.mxu0 0.0
    %561 = vmatprep.subr.mxu0 0.0
    %562 = vmatpush2.msra.mxu0 0.0
    %563 = vmatprep.subr.mxu0 0.0
    %564 = vmatpush2.msra.mxu0 0.0
    %565 = vmatprep.subr.mxu0 0.0
    %566 = vmatpush2.msra.mxu0 0.0
    %567 = vmatprep.subr.mxu0 0.0
    %568 = vmatpush2.msra.mxu0 0.0
    %569 = vmatprep.subr.mxu0 0.0
    %570 = vmatpush2.msra.mxu0 0.0
    %571 = vmatprep.subr.mxu0 0.0
    %572 = vmatpush2.msra.mxu0 0.0
    %573 = vmatprep.subr.mxu0 0.0
    %574 = vmatpush2.msra.mxu0 0.0
    %575 = vmatprep.subr.mxu0 0.0
    %576 = vmatpush2.msra.mxu0 0.0
    %577 = vmatprep.subr.mxu0 0.0
    %578 = vmatpush2.msra.mxu0 0.0
    %579 = vmatprep.subr.mxu0 0.0
    %580 = vmatpush2.msra.mxu0 0.0
    %581 = vmatprep.subr.mxu0 0.0
    %582 = vmatpush2.msra.mxu0 0.0
    %583 = vmatprep.subr.mxu0 0.0
    %584 = vmatpush2.msra.mxu0 0.0
    %585 = vmatprep.subr.mxu0 0.0
    %586 = vmatpush2.msra.mxu0 0.0
    %587 = vmatprep.subr.mxu0 0.0
    %588 = vmatpush2.msra.mxu0 0.0
    %589 = vmatprep.mubr.f32.mxu0 0.0
    %590 = vmatmul.mubr.f32.gmra.mxu0 %v476
    %v591 = vpop.f32.mrf.mxu0
    %v592 = vadd.f32 %v518, %v591
    %v593 = vpop.f32.mrf.mxu0
    %v594 = vadd.f32 %v522, %v593
    %595 = vmatprep.mubr.f32.mxu0 0.0
    %596 = vmatmul.mubr.f32.gmra.mxu0 %v477
    %v597 = vpop.f32.mrf.mxu0
    %v598 = vadd.f32 %v518, %v597
    %v599 = vpop.f32.mrf.mxu0
    %v600 = vadd.f32 %v522, %v599
    %601 = vmatprep.mubr.f32.mxu0 0.0
    %602 = vmatmul.mubr.f32.gmra.mxu0 %v478
    %v603 = vpop.f32.mrf.mxu0
    %v604 = vadd.f32 %v518, %v603
    %v605 = vpop.f32.mrf.mxu0
    %v606 = vadd.f32 %v522, %v605
    %607 = vmatprep.mubr.f32.mxu0 0.0
    %608 = vmatmul.mubr.f32.gmra.mxu0 %v479
    %v609 = vpop.f32.mrf.mxu0
    %v610 = vadd.f32 %v518, %v609
    %v611 = vpop.f32.mrf.mxu0
    %v612 = vadd.f32 %v522, %v611
    %613 = vmatprep.mubr.f32.mxu0 0.0
    %614 = vmatmul.mubr.f32.gmra.mxu0 %v480
    %v615 = vpop.f32.mrf.mxu0
    %v616 = vadd.f32 %v518, %v615
    %v617 = vpop.f32.mrf.mxu0
    %v618 = vadd.f32 %v522, %v617
    %619 = vdwg.mxu0
    %620 = vst [vmem:[#allocation11] sm:$0xff] %v592
    %621 = vst [vmem:[#allocation11 + $0x8] sm:$0xff] %v594
    %622 = vst [vmem:[#allocation11 + $0x10] sm:$0xff] %v598
    %623 = vst [vmem:[#allocation11 + $0x18] sm:$0xff] %v600
    %624 = vst [vmem:[#allocation11 + $0x20] sm:$0xff] %v604
    %625 = vst [vmem:[#allocation11 + $0x28] sm:$0xff] %v606
    %626 = vst [vmem:[#allocation11 + $0x30] sm:$0xff] %v610
    %627 = vst [vmem:[#allocation11 + $0x38] sm:$0xff] %v612
    %628 = vst [vmem:[#allocation11 + $0x40] sm:$0xff] %v616
    %629 = vst [vmem:[#allocation11 + $0x48] sm:$0xff] %v618
    // Predicated region
    $region58: #{tpu_custom_call.1} parent=1 // pred_check
      _
    $region59: #{tpu_custom_call.1} parent=1 // pred_check_branch
      %631 = sbr.rel (0) target = $region61
    $region60: #{tpu_custom_call.1} parent=1 // pred_region
      %s633 = ssub.s32 1280, 1280
      %634 = vsyncadd [#allocation4], %s633
      %s635 = sshll.u32 [#allocation11], 4
      %s636 = int_to_ptr.vmem [resolvable:$true] %s635
      %641 = dma.vmem_to_hbm [thread:$0]  %s636, 1280, %s9, [#allocation4], 256, 256, 16
    $region61: #{tpu_custom_call.1} parent=1 // pred_fallthru
      _
    // Predicated region
    $region62: #{tpu_custom_call.1} parent=1 // pred_check
      _
    $region63: #{tpu_custom_call.1} parent=1 // pred_check_branch
      %643 = sbr.rel (0) target = $region65
    $region64: #{tpu_custom_call.1} parent=1 // pred_region
      %644 = dma.done [#allocation4], 1280
    $region65: #{tpu_custom_call.1} parent=1 // pred_fallthru
      _
    %645 = vsyncpa [#allocation3], 1
    %646 = vsyncpa [#allocation6], 1
    %647 = vsyncpa [#allocation9], 1
    %648 = vsyncpa [#allocation4], 1

</llo_original>
